<compile_context>
chip_gen: v7x
topology: tpu7x:2x2x1
jax: 0.10.0
libtpu: 0.0.40
codegen_flags: <defaults>
</compile_context>

<pallas_src>
import functools

import numpy as np
import jax
import jax.numpy as jnp
from jax.experimental import pallas as pl
from jax.experimental.pallas import tpu as pltpu

C_OUT, KH, KW = 6, 5, 5
H_IN, W_IN = 30, 32                        # fc in_features = 6*13*14 pins H=30, W=32
H_POOL, W_POOL = 13, 14                    # (30-5+1)//2, (32-5+1)//2
FC_IN = C_OUT * H_POOL * W_POOL            # 1092
C_LANE = 16                                # lanes per channel slot (14 pooled cols + 2 pad)
LANES = 128                                # pooled-feature lane block (6*16 used + 32 pad)
K_IM2COL = 6 * W_IN                        # 192: six 32-wide input rows per pooled row
N_CONV = 4 * LANES                         # 512: four (row,col)-parity pool corners
ROW_PAD = 16                               # pooled rows padded 13 -> 16 (sublane multiple of 8)


def fused_cnn_kernel(x_ref, wc_ref, bc_ref, w2_ref, bf_ref, out_ref, lhs_ref):
    """Conv + ReLU + MaxPool + FC for a TB-sample block, conv on the MXU.

    x_ref:   (TB, 15, 64)  f32 -- x[b, p, 32*par + col] = input[b, 0, 2p + par, col]
    wc_ref:  (192, 512)    f32 -- banded conv weights; output lane = 128*(2r+s) + 16*c + q
    bc_ref:  (1, 128)      f32 -- conv bias per pooled-feature lane (zero on pad lanes)
    w2_ref:  (13, 128, TP) f32 -- FC weights per pooled row (zero on pad lanes)
    bf_ref:  (1, TP)       f32 -- FC bias (zero padded)
    out_ref: (TB, TP)      f32 -- logits (lane-dense, unmasked stores)
    lhs_ref: (TB, 16, 192) f32 -- scratch: im2col slab, lhs[b, p, 32j+col] = input row 2p+j
    """
    f32 = jnp.float32
    tb = x_ref.shape[0]
    tpad = out_ref.shape[1]

    # --- im2col: one 192-wide row per pooled output row (rows 13..15 are padding) ---
    lhs_ref[:, H_POOL:ROW_PAD, :] = jnp.zeros((tb, ROW_PAD - H_POOL, K_IM2COL), f32)
    for j in range(6):                       # input row 2p + j, with j = 2*d + par
        par, d = j % 2, j // 2
        lhs_ref[:, 0:H_POOL, 32 * j:32 * (j + 1)] = (
            x_ref[:, d:d + H_POOL, 32 * par:32 * par + 32])

    # --- conv: ONE MXU matmul; its 4 output 128-lane blocks are the 2x2 pool corners ---
    lhs = lhs_ref[...].reshape(tb * ROW_PAD, K_IM2COL)
    conv = jnp.dot(lhs, wc_ref[...], preferred_element_type=f32)        # (TB*16, 512)
    conv = conv.reshape(tb, ROW_PAD, N_CONV)

    # maxpool(relu(conv + b)) == relu(maxpool(conv) + b); corner blocks are vreg-aligned.
    pooled = jnp.maximum(jnp.maximum(conv[:, :, 0:128], conv[:, :, 128:256]),
                         jnp.maximum(conv[:, :, 256:384], conv[:, :, 384:512]))
    feat = jnp.maximum(pooled + bc_ref[0], 0.0)          # (TB, 16, 128); rows >= 13 unused

    # --- FC: 13 MXU matmul-accumulates over the 128 feature lanes per pooled row ---
    out = jnp.zeros((tb, tpad), f32)
    for p in range(H_POOL):
        out = out + jnp.dot(feat[:, p, :], w2_ref[p], preferred_element_type=f32)
    out_ref[...] = out + bf_ref[0]


def prepare_params(w_conv, b_conv, w_fc, b_fc):
    """One-time weight re-layout (hoisted out of the per-call jit path).

    wc_big[32*(r+di) + (2q+s+dj), 128*(2r+s) + 16c + q] = w_conv[c, 0, di, dj]
    so that (im2col lhs) @ wc_big yields conv[b, c, 2p+r, 2q+s] at lane 128*(2r+s)+16c+q.
    """
    f32 = jnp.float32
    t = w_fc.shape[1]
    tpad = 128 * ((t + 127) // 128)

    r, s, c, q, di, dj = np.indices((2, 2, C_OUT, W_POOL, KH, KW))
    k_idx = (32 * (r + di) + (2 * q + s + dj)).reshape(-1).astype(np.int32)
    n_idx = (128 * (2 * r + s) + C_LANE * c + q).reshape(-1).astype(np.int32)
    w3 = w_conv[:, 0, :, :].astype(f32)                                   # (6, 5, 5)
    vals = jnp.broadcast_to(w3[None, None, :, None, :, :],
                            (2, 2, C_OUT, W_POOL, KH, KW)).reshape(-1)
    wc_big = jnp.zeros((K_IM2COL, N_CONV), f32).at[k_idx, n_idx].add(vals)

    lane = np.arange(LANES)
    valid = (lane // C_LANE < C_OUT) & (lane % C_LANE < W_POOL)
    bc_lanes = jnp.where(valid,
                         jnp.pad(b_conv.astype(f32), (0, 8 - C_OUT))[lane // C_LANE],
                         0.0).reshape(1, LANES)

    # FC weights: torch-flatten order (c, p, q) -> [p, 16*c + q, t] with zero-padded lanes.
    wf = w_fc.astype(f32).reshape(C_OUT, H_POOL, W_POOL, t)
    wf = jnp.pad(wf, ((0, 8 - C_OUT), (0, 0), (0, C_LANE - W_POOL), (0, tpad - t)))
    w2 = jnp.transpose(wf, (1, 0, 2, 3)).reshape(H_POOL, LANES, tpad)
    bf = jnp.pad(b_fc.astype(f32), (0, tpad - t)).reshape(1, tpad)
    return wc_big, bc_lanes, w2, bf


@functools.partial(jax.jit, static_argnames=("target_dim",))
def cnn_forward(x, wc_big, bc_lanes, w2, bf, *, target_dim):
    """x: (N, 1, 30, 32) NCHW float32; returns (N, target_dim)."""
    n = x.shape[0]
    tpad = w2.shape[2]

    # Batch tiling: TB multiple of 8, up to 128; no forced multi-block split (the grid is a
    # serial loop on single-TensorCore chips; large N still yields >= 2 blocks for v7x).
    tb = min(128, 8 * ((n + 7) // 8))
    nblocks = (n + tb - 1) // tb
    n_pad = nblocks * tb

    # Free re-layout: rows 2p and 2p+1 packed along lanes -> (N, 15, 64), 3.84 KB/sample.
    xr = x.reshape(n, H_IN // 2, 2 * W_IN)
    xr = jnp.pad(xr, ((0, n_pad - n), (0, 0), (0, 0)))

    out = pl.pallas_call(
        fused_cnn_kernel,
        out_shape=jax.ShapeDtypeStruct((n_pad, tpad), jnp.float32),
        grid=(nblocks,),
        in_specs=[
            pl.BlockSpec((tb, H_IN // 2, 2 * W_IN), lambda i: (i, 0, 0)),
            pl.BlockSpec((K_IM2COL, N_CONV), lambda i: (0, 0)),
            pl.BlockSpec((1, LANES), lambda i: (0, 0)),
            pl.BlockSpec((H_POOL, LANES, tpad), lambda i: (0, 0, 0)),
            pl.BlockSpec((1, tpad), lambda i: (0, 0)),
        ],
        out_specs=pl.BlockSpec((tb, tpad), lambda i: (i, 0)),
        scratch_shapes=[pltpu.VMEM((tb, ROW_PAD, K_IM2COL), jnp.float32)],
        compiler_params=pltpu.CompilerParams(
            dimension_semantics=("parallel",),
            vmem_limit_bytes=32 * 1024 * 1024),
    )(xr, wc_big, bc_lanes, w2, bf)
    return out[:n, :target_dim]


def ref_forward(x, w_conv, b_conv, w_fc, b_fc):
    """Pure-JAX reference mirroring the PyTorch module."""
    conv = jax.lax.conv_general_dilated(
        x, w_conv, window_strides=(1, 1), padding="VALID",
        dimension_numbers=("NCHW", "OIHW", "NCHW"),
        precision=jax.lax.Precision.HIGHEST)
    r = jnp.maximum(conv + b_conv[None, :, None, None], 0.0)
    p = jax.lax.reduce_window(r, -jnp.inf, jax.lax.max,
                              (1, 1, 2, 2), (1, 1, 2, 2), "VALID")
    feats = p.reshape(p.shape[0], -1)
    return jnp.dot(feats, w_fc, precision=jax.lax.Precision.HIGHEST) + b_fc


if __name__ == "__main__":
    target_dim = 10
    n = 2
    key = jax.random.PRNGKey(0)
    kx, kw1, kb1, kw2, kb2 = jax.random.split(key, 5)

    x = jax.random.normal(kx, (n, 1, H_IN, W_IN), jnp.float32)

    # Deterministic parameter init (uniform, ~1/sqrt(fan_in) scale like torch defaults).
    fan1 = 1 * KH * KW
    w_conv = jax.random.uniform(kw1, (C_OUT, 1, KH, KW), jnp.float32, -1.0, 1.0) / jnp.sqrt(fan1)
    b_conv = jax.random.uniform(kb1, (C_OUT,), jnp.float32, -1.0, 1.0) / jnp.sqrt(fan1)
    fan2 = FC_IN
    # Note: stored transposed vs torch.nn.Linear ((in, out) instead of (out, in)).
    w_fc = jax.random.uniform(kw2, (FC_IN, target_dim), jnp.float32, -1.0, 1.0) / jnp.sqrt(fan2)
    b_fc = jax.random.uniform(kb2, (target_dim,), jnp.float32, -1.0, 1.0) / jnp.sqrt(fan2)

    params = prepare_params(w_conv, b_conv, w_fc, b_fc)
    out = jax.block_until_ready(cnn_forward(x, *params, target_dim=target_dim))
    ref = ref_forward(x, w_conv, b_conv, w_fc, b_fc)

    assert out.shape == (n, target_dim), out.shape
    assert bool(jnp.allclose(out, ref, rtol=1e-2, atol=1e-2)), (out, ref)
    print("KERNEL_OK")
</pallas_src>

<mosaic_0001>
module attributes {stable_mosaic.version = 11 : i64} {
  func.func @fused_cnn_kernel(%arg0: i32, %arg1: memref<8x15x64xf32, #tpu.memory_space<vmem>>, %arg2: memref<192x512xf32, #tpu.memory_space<vmem>>, %arg3: memref<1x128xf32, #tpu.memory_space<vmem>>, %arg4: memref<13x128x128xf32, #tpu.memory_space<vmem>>, %arg5: memref<1x128xf32, #tpu.memory_space<vmem>>, %arg6: memref<8x128xf32, #tpu.memory_space<vmem>>, %arg7: memref<8x16x192xf32, #tpu.memory_space<vmem>>) attributes {dimension_semantics = [#tpu.dimension_semantics<parallel>], iteration_bounds = array<i64: 1>, scalar_prefetch = 0 : i64, scratch_operands = 1 : i64, tpu.core_type = #tpu.core_type<tc>, window_params = [{transform_indices = @transform_0, window_bounds = array<i64: 8, 15, 64>}, {pipeline_mode = #tpu.pipeline_mode<synchronous>, transform_indices = @transform_1, window_bounds = array<i64: 192, 512>}, {pipeline_mode = #tpu.pipeline_mode<synchronous>, transform_indices = @transform_2, window_bounds = array<i64: 1, 128>}, {pipeline_mode = #tpu.pipeline_mode<synchronous>, transform_indices = @transform_3, window_bounds = array<i64: 13, 128, 128>}, {pipeline_mode = #tpu.pipeline_mode<synchronous>, transform_indices = @transform_4, window_bounds = array<i64: 1, 128>}, {transform_indices = @transform_5, window_bounds = array<i64: 8, 128>}]} {
    %cst = arith.constant 0.000000e+00 : f32
    %0 = vector.broadcast %cst : f32 to vector<8x3x192xf32>
    %c0 = arith.constant 0 : index
    %c13 = arith.constant 13 : index
    %c0_0 = arith.constant 0 : index
    %1 = vector.load %arg7[%c0, %c13, %c0_0] : memref<8x16x192xf32, #tpu.memory_space<vmem>>, vector<8x3x192xf32>
    tpu.vector_store %arg7[%c0, %c13, %c0_0], %0 {strides = array<i32>} : memref<8x16x192xf32, #tpu.memory_space<vmem>>, vector<8x3x192xf32>,
    %c0_1 = arith.constant 0 : index
    %c0_2 = arith.constant 0 : index
    %c0_3 = arith.constant 0 : index
    %2 = vector.load %arg1[%c0_1, %c0_2, %c0_3] : memref<8x15x64xf32, #tpu.memory_space<vmem>>, vector<8x13x32xf32>
    %c0_4 = arith.constant 0 : index
    %c0_5 = arith.constant 0 : index
    %c0_6 = arith.constant 0 : index
    %3 = vector.load %arg7[%c0_4, %c0_5, %c0_6] : memref<8x16x192xf32, #tpu.memory_space<vmem>>, vector<8x13x32xf32>
    tpu.vector_store %arg7[%c0_4, %c0_5, %c0_6], %2 {strides = array<i32>} : memref<8x16x192xf32, #tpu.memory_space<vmem>>, vector<8x13x32xf32>,
    %c0_7 = arith.constant 0 : index
    %c0_8 = arith.constant 0 : index
    %c32 = arith.constant 32 : index
    %4 = vector.load %arg1[%c0_7, %c0_8, %c32] : memref<8x15x64xf32, #tpu.memory_space<vmem>>, vector<8x13x32xf32>
    %c0_9 = arith.constant 0 : index
    %c0_10 = arith.constant 0 : index
    %c32_11 = arith.constant 32 : index
    %5 = vector.load %arg7[%c0_9, %c0_10, %c32_11] : memref<8x16x192xf32, #tpu.memory_space<vmem>>, vector<8x13x32xf32>
    tpu.vector_store %arg7[%c0_9, %c0_10, %c32_11], %4 {strides = array<i32>} : memref<8x16x192xf32, #tpu.memory_space<vmem>>, vector<8x13x32xf32>,
    %c0_12 = arith.constant 0 : index
    %c1 = arith.constant 1 : index
    %c0_13 = arith.constant 0 : index
    %6 = vector.load %arg1[%c0_12, %c1, %c0_13] : memref<8x15x64xf32, #tpu.memory_space<vmem>>, vector<8x13x32xf32>
    %c0_14 = arith.constant 0 : index
    %c0_15 = arith.constant 0 : index
    %c64 = arith.constant 64 : index
    %7 = vector.load %arg7[%c0_14, %c0_15, %c64] : memref<8x16x192xf32, #tpu.memory_space<vmem>>, vector<8x13x32xf32>
    tpu.vector_store %arg7[%c0_14, %c0_15, %c64], %6 {strides = array<i32>} : memref<8x16x192xf32, #tpu.memory_space<vmem>>, vector<8x13x32xf32>,
    %c0_16 = arith.constant 0 : index
    %c1_17 = arith.constant 1 : index
    %c32_18 = arith.constant 32 : index
    %8 = vector.load %arg1[%c0_16, %c1_17, %c32_18] : memref<8x15x64xf32, #tpu.memory_space<vmem>>, vector<8x13x32xf32>
    %c0_19 = arith.constant 0 : index
    %c0_20 = arith.constant 0 : index
    %c96 = arith.constant 96 : index
    %9 = vector.load %arg7[%c0_19, %c0_20, %c96] : memref<8x16x192xf32, #tpu.memory_space<vmem>>, vector<8x13x32xf32>
    tpu.vector_store %arg7[%c0_19, %c0_20, %c96], %8 {strides = array<i32>} : memref<8x16x192xf32, #tpu.memory_space<vmem>>, vector<8x13x32xf32>,
    %c0_21 = arith.constant 0 : index
    %c2 = arith.constant 2 : index
    %c0_22 = arith.constant 0 : index
    %10 = vector.load %arg1[%c0_21, %c2, %c0_22] : memref<8x15x64xf32, #tpu.memory_space<vmem>>, vector<8x13x32xf32>
    %c0_23 = arith.constant 0 : index
    %c0_24 = arith.constant 0 : index
    %c128 = arith.constant 128 : index
    %11 = vector.load %arg7[%c0_23, %c0_24, %c128] : memref<8x16x192xf32, #tpu.memory_space<vmem>>, vector<8x13x32xf32>
    tpu.vector_store %arg7[%c0_23, %c0_24, %c128], %10 {strides = array<i32>} : memref<8x16x192xf32, #tpu.memory_space<vmem>>, vector<8x13x32xf32>,
    %c0_25 = arith.constant 0 : index
    %c2_26 = arith.constant 2 : index
    %c32_27 = arith.constant 32 : index
    %12 = vector.load %arg1[%c0_25, %c2_26, %c32_27] : memref<8x15x64xf32, #tpu.memory_space<vmem>>, vector<8x13x32xf32>
    %c0_28 = arith.constant 0 : index
    %c0_29 = arith.constant 0 : index
    %c160 = arith.constant 160 : index
    %13 = vector.load %arg7[%c0_28, %c0_29, %c160] : memref<8x16x192xf32, #tpu.memory_space<vmem>>, vector<8x13x32xf32>
    tpu.vector_store %arg7[%c0_28, %c0_29, %c160], %12 {strides = array<i32>} : memref<8x16x192xf32, #tpu.memory_space<vmem>>, vector<8x13x32xf32>,
    %c0_30 = arith.constant 0 : index
    %c0_31 = arith.constant 0 : index
    %c0_32 = arith.constant 0 : index
    %14 = vector.load %arg7[%c0_30, %c0_31, %c0_32] : memref<8x16x192xf32, #tpu.memory_space<vmem>>, vector<8x16x192xf32>
    %15 = vector.shape_cast %14 : vector<8x16x192xf32> to vector<128x192xf32>
    %c0_33 = arith.constant 0 : index
    %c0_34 = arith.constant 0 : index
    %16 = vector.load %arg2[%c0_33, %c0_34] : memref<192x512xf32, #tpu.memory_space<vmem>>, vector<192x512xf32>
    %cst_35 = arith.constant dense<0.000000e+00> : vector<128x512xf32>
    %17 = tpu.matmul %15, %16, %cst_35 {dimension_numbers = #tpu.dot_dimension_numbers<[1], [0], [0], [1], [0, 0, 1, 1], [], []>} : vector<128x192xf32>, vector<192x512xf32>, vector<128x512xf32> -> vector<128x512xf32>
    %18 = vector.shape_cast %17 : vector<128x512xf32> to vector<8x16x512xf32>
    %19 = vector.extract_strided_slice %18 {offsets = [0, 0, 0], sizes = [8, 16, 128], strides = [1, 1, 1]} : vector<8x16x512xf32> to vector<8x16x128xf32>
    %20 = vector.extract_strided_slice %18 {offsets = [0, 0, 128], sizes = [8, 16, 128], strides = [1, 1, 1]} : vector<8x16x512xf32> to vector<8x16x128xf32>
    %21 = arith.maximumf %19, %20 : vector<8x16x128xf32>
    %22 = vector.extract_strided_slice %18 {offsets = [0, 0, 256], sizes = [8, 16, 128], strides = [1, 1, 1]} : vector<8x16x512xf32> to vector<8x16x128xf32>
    %23 = vector.extract_strided_slice %18 {offsets = [0, 0, 384], sizes = [8, 16, 128], strides = [1, 1, 1]} : vector<8x16x512xf32> to vector<8x16x128xf32>
    %24 = arith.maximumf %22, %23 : vector<8x16x128xf32>
    %25 = arith.maximumf %21, %24 : vector<8x16x128xf32>
    %c0_36 = arith.constant 0 : index
    %c0_37 = arith.constant 0 : index
    %26 = vector.load %arg3[%c0_36, %c0_37] : memref<1x128xf32, #tpu.memory_space<vmem>>, vector<1x128xf32>
    %27 = vector.shape_cast %26 : vector<1x128xf32> to vector<128xf32>
    %28 = vector.shape_cast %27 : vector<128xf32> to vector<1x1x128xf32>
    %29 = vector.broadcast %28 : vector<1x1x128xf32> to vector<8x16x128xf32>
    %30 = arith.addf %25, %29 : vector<8x16x128xf32>
    %cst_38 = arith.constant 0.000000e+00 : f32
    %31 = vector.broadcast %cst_38 : f32 to vector<8x16x128xf32>
    %32 = arith.maximumf %30, %31 : vector<8x16x128xf32>
    %cst_39 = arith.constant 0.000000e+00 : f32
    %33 = vector.broadcast %cst_39 : f32 to vector<8x128xf32>
    %34 = vector.extract_strided_slice %32 {offsets = [0, 0, 0], sizes = [8, 1, 128], strides = [1, 1, 1]} : vector<8x16x128xf32> to vector<8x1x128xf32>
    %35 = vector.shape_cast %34 : vector<8x1x128xf32> to vector<8x128xf32>
    %c0_40 = arith.constant 0 : index
    %c0_41 = arith.constant 0 : index
    %c0_42 = arith.constant 0 : index
    %36 = vector.load %arg4[%c0_40, %c0_41, %c0_42] : memref<13x128x128xf32, #tpu.memory_space<vmem>>, vector<1x128x128xf32>
    %37 = vector.shape_cast %36 : vector<1x128x128xf32> to vector<128x128xf32>
    %cst_43 = arith.constant dense<0.000000e+00> : vector<8x128xf32>
    %38 = tpu.matmul %35, %37, %cst_43 {dimension_numbers = #tpu.dot_dimension_numbers<[1], [0], [0], [1], [0, 0, 1, 1], [], []>} : vector<8x128xf32>, vector<128x128xf32>, vector<8x128xf32> -> vector<8x128xf32>
    %39 = arith.addf %33, %38 : vector<8x128xf32>
    %40 = vector.extract_strided_slice %32 {offsets = [0, 1, 0], sizes = [8, 1, 128], strides = [1, 1, 1]} : vector<8x16x128xf32> to vector<8x1x128xf32>
    %41 = vector.shape_cast %40 : vector<8x1x128xf32> to vector<8x128xf32>
    %c1_44 = arith.constant 1 : index
    %c0_45 = arith.constant 0 : index
    %c0_46 = arith.constant 0 : index
    %42 = vector.load %arg4[%c1_44, %c0_45, %c0_46] : memref<13x128x128xf32, #tpu.memory_space<vmem>>, vector<1x128x128xf32>
    %43 = vector.shape_cast %42 : vector<1x128x128xf32> to vector<128x128xf32>
    %cst_47 = arith.constant dense<0.000000e+00> : vector<8x128xf32>
    %44 = tpu.matmul %41, %43, %cst_47 {dimension_numbers = #tpu.dot_dimension_numbers<[1], [0], [0], [1], [0, 0, 1, 1], [], []>} : vector<8x128xf32>, vector<128x128xf32>, vector<8x128xf32> -> vector<8x128xf32>
    %45 = arith.addf %39, %44 : vector<8x128xf32>
    %46 = vector.extract_strided_slice %32 {offsets = [0, 2, 0], sizes = [8, 1, 128], strides = [1, 1, 1]} : vector<8x16x128xf32> to vector<8x1x128xf32>
    %47 = vector.shape_cast %46 : vector<8x1x128xf32> to vector<8x128xf32>
    %c2_48 = arith.constant 2 : index
    %c0_49 = arith.constant 0 : index
    %c0_50 = arith.constant 0 : index
    %48 = vector.load %arg4[%c2_48, %c0_49, %c0_50] : memref<13x128x128xf32, #tpu.memory_space<vmem>>, vector<1x128x128xf32>
    %49 = vector.shape_cast %48 : vector<1x128x128xf32> to vector<128x128xf32>
    %cst_51 = arith.constant dense<0.000000e+00> : vector<8x128xf32>
    %50 = tpu.matmul %47, %49, %cst_51 {dimension_numbers = #tpu.dot_dimension_numbers<[1], [0], [0], [1], [0, 0, 1, 1], [], []>} : vector<8x128xf32>, vector<128x128xf32>, vector<8x128xf32> -> vector<8x128xf32>
    %51 = arith.addf %45, %50 : vector<8x128xf32>
    %52 = vector.extract_strided_slice %32 {offsets = [0, 3, 0], sizes = [8, 1, 128], strides = [1, 1, 1]} : vector<8x16x128xf32> to vector<8x1x128xf32>
    %53 = vector.shape_cast %52 : vector<8x1x128xf32> to vector<8x128xf32>
    %c3 = arith.constant 3 : index
    %c0_52 = arith.constant 0 : index
    %c0_53 = arith.constant 0 : index
    %54 = vector.load %arg4[%c3, %c0_52, %c0_53] : memref<13x128x128xf32, #tpu.memory_space<vmem>>, vector<1x128x128xf32>
    %55 = vector.shape_cast %54 : vector<1x128x128xf32> to vector<128x128xf32>
    %cst_54 = arith.constant dense<0.000000e+00> : vector<8x128xf32>
    %56 = tpu.matmul %53, %55, %cst_54 {dimension_numbers = #tpu.dot_dimension_numbers<[1], [0], [0], [1], [0, 0, 1, 1], [], []>} : vector<8x128xf32>, vector<128x128xf32>, vector<8x128xf32> -> vector<8x128xf32>
    %57 = arith.addf %51, %56 : vector<8x128xf32>
    %58 = vector.extract_strided_slice %32 {offsets = [0, 4, 0], sizes = [8, 1, 128], strides = [1, 1, 1]} : vector<8x16x128xf32> to vector<8x1x128xf32>
    %59 = vector.shape_cast %58 : vector<8x1x128xf32> to vector<8x128xf32>
    %c4 = arith.constant 4 : index
    %c0_55 = arith.constant 0 : index
    %c0_56 = arith.constant 0 : index
    %60 = vector.load %arg4[%c4, %c0_55, %c0_56] : memref<13x128x128xf32, #tpu.memory_space<vmem>>, vector<1x128x128xf32>
    %61 = vector.shape_cast %60 : vector<1x128x128xf32> to vector<128x128xf32>
    %cst_57 = arith.constant dense<0.000000e+00> : vector<8x128xf32>
    %62 = tpu.matmul %59, %61, %cst_57 {dimension_numbers = #tpu.dot_dimension_numbers<[1], [0], [0], [1], [0, 0, 1, 1], [], []>} : vector<8x128xf32>, vector<128x128xf32>, vector<8x128xf32> -> vector<8x128xf32>
    %63 = arith.addf %57, %62 : vector<8x128xf32>
    %64 = vector.extract_strided_slice %32 {offsets = [0, 5, 0], sizes = [8, 1, 128], strides = [1, 1, 1]} : vector<8x16x128xf32> to vector<8x1x128xf32>
    %65 = vector.shape_cast %64 : vector<8x1x128xf32> to vector<8x128xf32>
    %c5 = arith.constant 5 : index
    %c0_58 = arith.constant 0 : index
    %c0_59 = arith.constant 0 : index
    %66 = vector.load %arg4[%c5, %c0_58, %c0_59] : memref<13x128x128xf32, #tpu.memory_space<vmem>>, vector<1x128x128xf32>
    %67 = vector.shape_cast %66 : vector<1x128x128xf32> to vector<128x128xf32>
    %cst_60 = arith.constant dense<0.000000e+00> : vector<8x128xf32>
    %68 = tpu.matmul %65, %67, %cst_60 {dimension_numbers = #tpu.dot_dimension_numbers<[1], [0], [0], [1], [0, 0, 1, 1], [], []>} : vector<8x128xf32>, vector<128x128xf32>, vector<8x128xf32> -> vector<8x128xf32>
    %69 = arith.addf %63, %68 : vector<8x128xf32>
    %70 = vector.extract_strided_slice %32 {offsets = [0, 6, 0], sizes = [8, 1, 128], strides = [1, 1, 1]} : vector<8x16x128xf32> to vector<8x1x128xf32>
    %71 = vector.shape_cast %70 : vector<8x1x128xf32> to vector<8x128xf32>
    %c6 = arith.constant 6 : index
    %c0_61 = arith.constant 0 : index
    %c0_62 = arith.constant 0 : index
    %72 = vector.load %arg4[%c6, %c0_61, %c0_62] : memref<13x128x128xf32, #tpu.memory_space<vmem>>, vector<1x128x128xf32>
    %73 = vector.shape_cast %72 : vector<1x128x128xf32> to vector<128x128xf32>
    %cst_63 = arith.constant dense<0.000000e+00> : vector<8x128xf32>
    %74 = tpu.matmul %71, %73, %cst_63 {dimension_numbers = #tpu.dot_dimension_numbers<[1], [0], [0], [1], [0, 0, 1, 1], [], []>} : vector<8x128xf32>, vector<128x128xf32>, vector<8x128xf32> -> vector<8x128xf32>
    %75 = arith.addf %69, %74 : vector<8x128xf32>
    %76 = vector.extract_strided_slice %32 {offsets = [0, 7, 0], sizes = [8, 1, 128], strides = [1, 1, 1]} : vector<8x16x128xf32> to vector<8x1x128xf32>
    %77 = vector.shape_cast %76 : vector<8x1x128xf32> to vector<8x128xf32>
    %c7 = arith.constant 7 : index
    %c0_64 = arith.constant 0 : index
    %c0_65 = arith.constant 0 : index
    %78 = vector.load %arg4[%c7, %c0_64, %c0_65] : memref<13x128x128xf32, #tpu.memory_space<vmem>>, vector<1x128x128xf32>
    %79 = vector.shape_cast %78 : vector<1x128x128xf32> to vector<128x128xf32>
    %cst_66 = arith.constant dense<0.000000e+00> : vector<8x128xf32>
    %80 = tpu.matmul %77, %79, %cst_66 {dimension_numbers = #tpu.dot_dimension_numbers<[1], [0], [0], [1], [0, 0, 1, 1], [], []>} : vector<8x128xf32>, vector<128x128xf32>, vector<8x128xf32> -> vector<8x128xf32>
    %81 = arith.addf %75, %80 : vector<8x128xf32>
    %82 = vector.extract_strided_slice %32 {offsets = [0, 8, 0], sizes = [8, 1, 128], strides = [1, 1, 1]} : vector<8x16x128xf32> to vector<8x1x128xf32>
    %83 = vector.shape_cast %82 : vector<8x1x128xf32> to vector<8x128xf32>
    %c8 = arith.constant 8 : index
    %c0_67 = arith.constant 0 : index
    %c0_68 = arith.constant 0 : index
    %84 = vector.load %arg4[%c8, %c0_67, %c0_68] : memref<13x128x128xf32, #tpu.memory_space<vmem>>, vector<1x128x128xf32>
    %85 = vector.shape_cast %84 : vector<1x128x128xf32> to vector<128x128xf32>
    %cst_69 = arith.constant dense<0.000000e+00> : vector<8x128xf32>
    %86 = tpu.matmul %83, %85, %cst_69 {dimension_numbers = #tpu.dot_dimension_numbers<[1], [0], [0], [1], [0, 0, 1, 1], [], []>} : vector<8x128xf32>, vector<128x128xf32>, vector<8x128xf32> -> vector<8x128xf32>
    %87 = arith.addf %81, %86 : vector<8x128xf32>
    %88 = vector.extract_strided_slice %32 {offsets = [0, 9, 0], sizes = [8, 1, 128], strides = [1, 1, 1]} : vector<8x16x128xf32> to vector<8x1x128xf32>
    %89 = vector.shape_cast %88 : vector<8x1x128xf32> to vector<8x128xf32>
    %c9 = arith.constant 9 : index
    %c0_70 = arith.constant 0 : index
    %c0_71 = arith.constant 0 : index
    %90 = vector.load %arg4[%c9, %c0_70, %c0_71] : memref<13x128x128xf32, #tpu.memory_space<vmem>>, vector<1x128x128xf32>
    %91 = vector.shape_cast %90 : vector<1x128x128xf32> to vector<128x128xf32>
    %cst_72 = arith.constant dense<0.000000e+00> : vector<8x128xf32>
    %92 = tpu.matmul %89, %91, %cst_72 {dimension_numbers = #tpu.dot_dimension_numbers<[1], [0], [0], [1], [0, 0, 1, 1], [], []>} : vector<8x128xf32>, vector<128x128xf32>, vector<8x128xf32> -> vector<8x128xf32>
    %93 = arith.addf %87, %92 : vector<8x128xf32>
    %94 = vector.extract_strided_slice %32 {offsets = [0, 10, 0], sizes = [8, 1, 128], strides = [1, 1, 1]} : vector<8x16x128xf32> to vector<8x1x128xf32>
    %95 = vector.shape_cast %94 : vector<8x1x128xf32> to vector<8x128xf32>
    %c10 = arith.constant 10 : index
    %c0_73 = arith.constant 0 : index
    %c0_74 = arith.constant 0 : index
    %96 = vector.load %arg4[%c10, %c0_73, %c0_74] : memref<13x128x128xf32, #tpu.memory_space<vmem>>, vector<1x128x128xf32>
    %97 = vector.shape_cast %96 : vector<1x128x128xf32> to vector<128x128xf32>
    %cst_75 = arith.constant dense<0.000000e+00> : vector<8x128xf32>
    %98 = tpu.matmul %95, %97, %cst_75 {dimension_numbers = #tpu.dot_dimension_numbers<[1], [0], [0], [1], [0, 0, 1, 1], [], []>} : vector<8x128xf32>, vector<128x128xf32>, vector<8x128xf32> -> vector<8x128xf32>
    %99 = arith.addf %93, %98 : vector<8x128xf32>
    %100 = vector.extract_strided_slice %32 {offsets = [0, 11, 0], sizes = [8, 1, 128], strides = [1, 1, 1]} : vector<8x16x128xf32> to vector<8x1x128xf32>
    %101 = vector.shape_cast %100 : vector<8x1x128xf32> to vector<8x128xf32>
    %c11 = arith.constant 11 : index
    %c0_76 = arith.constant 0 : index
    %c0_77 = arith.constant 0 : index
    %102 = vector.load %arg4[%c11, %c0_76, %c0_77] : memref<13x128x128xf32, #tpu.memory_space<vmem>>, vector<1x128x128xf32>
    %103 = vector.shape_cast %102 : vector<1x128x128xf32> to vector<128x128xf32>
    %cst_78 = arith.constant dense<0.000000e+00> : vector<8x128xf32>
    %104 = tpu.matmul %101, %103, %cst_78 {dimension_numbers = #tpu.dot_dimension_numbers<[1], [0], [0], [1], [0, 0, 1, 1], [], []>} : vector<8x128xf32>, vector<128x128xf32>, vector<8x128xf32> -> vector<8x128xf32>
    %105 = arith.addf %99, %104 : vector<8x128xf32>
    %106 = vector.extract_strided_slice %32 {offsets = [0, 12, 0], sizes = [8, 1, 128], strides = [1, 1, 1]} : vector<8x16x128xf32> to vector<8x1x128xf32>
    %107 = vector.shape_cast %106 : vector<8x1x128xf32> to vector<8x128xf32>
    %c12 = arith.constant 12 : index
    %c0_79 = arith.constant 0 : index
    %c0_80 = arith.constant 0 : index
    %108 = vector.load %arg4[%c12, %c0_79, %c0_80] : memref<13x128x128xf32, #tpu.memory_space<vmem>>, vector<1x128x128xf32>
    %109 = vector.shape_cast %108 : vector<1x128x128xf32> to vector<128x128xf32>
    %cst_81 = arith.constant dense<0.000000e+00> : vector<8x128xf32>
    %110 = tpu.matmul %107, %109, %cst_81 {dimension_numbers = #tpu.dot_dimension_numbers<[1], [0], [0], [1], [0, 0, 1, 1], [], []>} : vector<8x128xf32>, vector<128x128xf32>, vector<8x128xf32> -> vector<8x128xf32>
    %111 = arith.addf %105, %110 : vector<8x128xf32>
    %c0_82 = arith.constant 0 : index
    %c0_83 = arith.constant 0 : index
    %112 = vector.load %arg5[%c0_82, %c0_83] : memref<1x128xf32, #tpu.memory_space<vmem>>, vector<1x128xf32>
    %113 = vector.shape_cast %112 : vector<1x128xf32> to vector<128xf32>
    %114 = vector.shape_cast %113 : vector<128xf32> to vector<1x128xf32>
    %115 = vector.broadcast %114 : vector<1x128xf32> to vector<8x128xf32>
    %116 = arith.addf %111, %115 : vector<8x128xf32>
    %c0_84 = arith.constant 0 : index
    %c0_85 = arith.constant 0 : index
    %117 = vector.load %arg6[%c0_84, %c0_85] : memref<8x128xf32, #tpu.memory_space<vmem>>, vector<8x128xf32>
    tpu.vector_store %arg6[%c0_84, %c0_85], %116 {strides = array<i32>} : memref<8x128xf32, #tpu.memory_space<vmem>>, vector<8x128xf32>,
    return
  }
  func.func @transform_0(%arg0: i32) -> (i32, i32, i32) {
    %c0_i32 = arith.constant 0 : i32
    %c0_i32_0 = arith.constant 0 : i32
    %c0_i32_1 = arith.constant 0 : i32
    return %arg0, %c0_i32, %c0_i32_0 : i32, i32, i32
  }
  func.func @transform_1(%arg0: i32) -> (i32, i32) {
    %c0_i32 = arith.constant 0 : i32
    %c0_i32_0 = arith.constant 0 : i32
    %c0_i32_1 = arith.constant 0 : i32
    return %c0_i32, %c0_i32_0 : i32, i32
  }
  func.func @transform_2(%arg0: i32) -> (i32, i32) {
    %c0_i32 = arith.constant 0 : i32
    %c0_i32_0 = arith.constant 0 : i32
    %c0_i32_1 = arith.constant 0 : i32
    return %c0_i32, %c0_i32_0 : i32, i32
  }
  func.func @transform_3(%arg0: i32) -> (i32, i32, i32) {
    %c0_i32 = arith.constant 0 : i32
    %c0_i32_0 = arith.constant 0 : i32
    %c0_i32_1 = arith.constant 0 : i32
    %c0_i32_2 = arith.constant 0 : i32
    return %c0_i32, %c0_i32_0, %c0_i32_1 : i32, i32, i32
  }
  func.func @transform_4(%arg0: i32) -> (i32, i32) {
    %c0_i32 = arith.constant 0 : i32
    %c0_i32_0 = arith.constant 0 : i32
    %c0_i32_1 = arith.constant 0 : i32
    return %c0_i32, %c0_i32_0 : i32, i32
  }
  func.func @transform_5(%arg0: i32) -> (i32, i32) {
    %c0_i32 = arith.constant 0 : i32
    %c0_i32_0 = arith.constant 0 : i32
    return %arg0, %c0_i32 : i32, i32
  }
}

</mosaic_0001>

<llo_original>
// kernel: cnn_forward.1
$region0: #{cnn_forward.1}
  #allocation0 [shape = 'u32[]', space=smem, size = 0x4, offset = 0x4, fixed_abs, tag = 'smem constant byte address 0x4 - core index']
  #allocation1 [shape = 'u32[144,128]{1,0:T(1,128)}', space=vmem, size = 0x12000, scoped, tag = 'internal scratch']
  #allocation2 [shape = 'f32[8,16,192]{2,1,0:T(8,128)}', space=vmem, size = 0x20000, scoped, tag = 'scratch operand']
  %s0 = inlined_call_operand.vmem [shape: f32[8,15,64], index: 0, kind: input, shape index: {}]
  %s1 = inlined_call_operand.hbm [shape: f32[192,512], index: 1, kind: input, shape index: {}]
  %s2 = inlined_call_operand.vmem [shape: f32[1,128], index: 2, kind: input, shape index: {}]
  %s3 = inlined_call_operand.hbm [shape: f32[13,128,128], index: 3, kind: input, shape index: {}]
  %s4 = inlined_call_operand.vmem [shape: f32[1,128], index: 4, kind: input, shape index: {}]
  %s5 = inlined_call_operand.vmem [shape: f32[8,128], index: 5, kind: output, shape index: {}]
  %s6 = sld [smem:[#allocation0]]
  $region38: #{cnn_forward.1} parent=0
    _
  %s8 = ssub.s32 1, %s6
  %s9 = scalar_select 0, %s8, %s6
  $region1: #{cnn_forward.1} parent=0
    #allocation3 [shape = 'u8[393216]{0}', space=vmem, size = 0x60000, scoped, tag = 'input window, operand 1, single buffered']
    #allocation4 [shape = 's32[1]{0}', space=sflag, size = 0x4, scoped, tag = 'scoped memory for cnn_forward.1']
    #allocation5 [shape = 'u8[851968]{0}', space=vmem, size = 0xd0000, scoped, tag = 'input window, operand 3, single buffered']
    #allocation6 [shape = 's32[1]{0}', space=sflag, size = 0x4, scoped, tag = 'scoped memory for cnn_forward.1']
    %10 = vsyncpa [#allocation4], 0
    %11 = vsyncpa [#allocation6], 0
    // Predicated region
    $region2: #{cnn_forward.1} parent=1 // pred_check
      _
    $region3: #{cnn_forward.1} parent=1 // pred_check_branch
      %13 = sbr.rel (0) target = $region5
    $region4: #{cnn_forward.1} parent=1 // pred_region
      _
    $region5: #{cnn_forward.1} parent=1 // pred_fallthru
      _
    // Predicated region
    $region6: #{cnn_forward.1} parent=1 // pred_check
      _
    $region7: #{cnn_forward.1} parent=1 // pred_check_branch
      %15 = sbr.rel (0) target = $region9
    $region8: #{cnn_forward.1} parent=1 // pred_region
      %s17 = ssub.s32 12288, 12288
      %18 = vsyncadd [#allocation4], %s17
      %s19 = sshll.u32 [#allocation3], 4
      %s20 = int_to_ptr.vmem [resolvable:$true] %s19
      %25 = dma.hbm_to_vmem [thread:$0]  %s1, 12288, %s20, [#allocation4], 512, 512, 32
    $region9: #{cnn_forward.1} parent=1 // pred_fallthru
      _
    // Predicated region
    $region10: #{cnn_forward.1} parent=1 // pred_check
      _
    $region11: #{cnn_forward.1} parent=1 // pred_check_branch
      %27 = sbr.rel (0) target = $region13
    $region12: #{cnn_forward.1} parent=1 // pred_region
      _
    $region13: #{cnn_forward.1} parent=1 // pred_fallthru
      _
    // Predicated region
    $region14: #{cnn_forward.1} parent=1 // pred_check
      _
    $region15: #{cnn_forward.1} parent=1 // pred_check_branch
      %29 = sbr.rel (0) target = $region17
    $region16: #{cnn_forward.1} parent=1 // pred_region
      %s31 = ssub.s32 26624, 26624
      %32 = vsyncadd [#allocation6], %s31
      %s33 = sshll.u32 [#allocation5], 4
      %s34 = int_to_ptr.vmem [resolvable:$true] %s33
      %39 = dma.hbm_to_vmem [thread:$0]  %s3, 26624, %s34, [#allocation6], 128, 128, 8
    $region17: #{cnn_forward.1} parent=1 // pred_fallthru
      _
    // Predicated region
    $region18: #{cnn_forward.1} parent=1 // pred_check
      _
    $region19: #{cnn_forward.1} parent=1 // pred_check_branch
      %41 = sbr.rel (0) target = $region21
    $region20: #{cnn_forward.1} parent=1 // pred_region
      _
    $region21: #{cnn_forward.1} parent=1 // pred_fallthru
      _
    // Predicated region
    $region22: #{cnn_forward.1} parent=1 // pred_check
      _
    $region23: #{cnn_forward.1} parent=1 // pred_check_branch
      %43 = sbr.rel (0) target = $region25
    $region24: #{cnn_forward.1} parent=1 // pred_region
      %44 = dma.done [#allocation4], 12288
    $region25: #{cnn_forward.1} parent=1 // pred_fallthru
      _
    // Predicated region
    $region26: #{cnn_forward.1} parent=1 // pred_check
      _
    $region27: #{cnn_forward.1} parent=1 // pred_check_branch
      %46 = sbr.rel (0) target = $region29
    $region28: #{cnn_forward.1} parent=1 // pred_region
      %47 = dma.done [#allocation6], 26624
    $region29: #{cnn_forward.1} parent=1 // pred_fallthru
      _
    %48 = vst [vmem:[#allocation2 + $0x10] sm:$0xe0] 0.0
    %vm49 = vcmask 523269
    %50 = vst.msk [vmem:[#allocation2 + $0x18] sm:$0xe0] %vm49, 0.0
    %51 = vst [vmem:[#allocation2 + $0x30] sm:$0xe0] 0.0
    %52 = vst.msk [vmem:[#allocation2 + $0x38] sm:$0xe0] %vm49, 0.0
    %53 = vst [vmem:[#allocation2 + $0x50] sm:$0xe0] 0.0
    %54 = vst.msk [vmem:[#allocation2 + $0x58] sm:$0xe0] %vm49, 0.0
    %55 = vst [vmem:[#allocation2 + $0x70] sm:$0xe0] 0.0
    %56 = vst.msk [vmem:[#allocation2 + $0x78] sm:$0xe0] %vm49, 0.0
    %57 = vst [vmem:[#allocation2 + $0x90] sm:$0xe0] 0.0
    %58 = vst.msk [vmem:[#allocation2 + $0x98] sm:$0xe0] %vm49, 0.0
    %59 = vst [vmem:[#allocation2 + $0xb0] sm:$0xe0] 0.0
    %60 = vst.msk [vmem:[#allocation2 + $0xb8] sm:$0xe0] %vm49, 0.0
    %61 = vst [vmem:[#allocation2 + $0xd0] sm:$0xe0] 0.0
    %62 = vst.msk [vmem:[#allocation2 + $0xd8] sm:$0xe0] %vm49, 0.0
    %63 = vst [vmem:[#allocation2 + $0xf0] sm:$0xe0] 0.0
    %64 = vst.msk [vmem:[#allocation2 + $0xf8] sm:$0xe0] %vm49, 0.0
    %v65 = vld [vmem:[%s0] sm:$0xff]
    %v66 = vld [vmem:[%s0 + $0x8] sm:$0x1f]
    %v67 = vld [vmem:[%s0 + $0x10] sm:$0xff]
    %v68 = vld [vmem:[%s0 + $0x18] sm:$0x1f]
    %v69 = vld [vmem:[%s0 + $0x20] sm:$0xff]
    %v70 = vld [vmem:[%s0 + $0x28] sm:$0x1f]
    %v71 = vld [vmem:[%s0 + $0x30] sm:$0xff]
    %v72 = vld [vmem:[%s0 + $0x38] sm:$0x1f]
    %v73 = vld [vmem:[%s0 + $0x40] sm:$0xff]
    %v74 = vld [vmem:[%s0 + $0x48] sm:$0x1f]
    %v75 = vld [vmem:[%s0 + $0x50] sm:$0xff]
    %v76 = vld [vmem:[%s0 + $0x58] sm:$0x1f]
    %v77 = vld [vmem:[%s0 + $0x60] sm:$0xff]
    %v78 = vld [vmem:[%s0 + $0x68] sm:$0x1f]
    %v79 = vld [vmem:[%s0 + $0x70] sm:$0xff]
    %v80 = vld [vmem:[%s0 + $0x78] sm:$0x1f]
    %vm81 = vcmask 261120
    %82 = vst.msk [vmem:[#allocation2] sm:$0xff] %vm81, %v65
    %vm83 = vcmask 258048
    %84 = vst.msk [vmem:[#allocation2 + $0x10] sm:$0x1f] %vm83, %v66
    %85 = vst.msk [vmem:[#allocation2 + $0x20] sm:$0xff] %vm81, %v67
    %86 = vst.msk [vmem:[#allocation2 + $0x30] sm:$0x1f] %vm83, %v68
    %87 = vst.msk [vmem:[#allocation2 + $0x40] sm:$0xff] %vm81, %v69
    %88 = vst.msk [vmem:[#allocation2 + $0x50] sm:$0x1f] %vm83, %v70
    %89 = vst.msk [vmem:[#allocation2 + $0x60] sm:$0xff] %vm81, %v71
    %90 = vst.msk [vmem:[#allocation2 + $0x70] sm:$0x1f] %vm83, %v72
    %91 = vst.msk [vmem:[#allocation2 + $0x80] sm:$0xff] %vm81, %v73
    %92 = vst.msk [vmem:[#allocation2 + $0x90] sm:$0x1f] %vm83, %v74
    %93 = vst.msk [vmem:[#allocation2 + $0xa0] sm:$0xff] %vm81, %v75
    %94 = vst.msk [vmem:[#allocation2 + $0xb0] sm:$0x1f] %vm83, %v76
    %95 = vst.msk [vmem:[#allocation2 + $0xc0] sm:$0xff] %vm81, %v77
    %96 = vst.msk [vmem:[#allocation2 + $0xd0] sm:$0x1f] %vm83, %v78
    %97 = vst.msk [vmem:[#allocation2 + $0xe0] sm:$0xff] %vm81, %v79
    %98 = vst.msk [vmem:[#allocation2 + $0xf0] sm:$0x1f] %vm83, %v80
    %v99 = vld [vmem:[%s0] sm:$0xff]
    %v100 = vld [vmem:[%s0 + $0x8] sm:$0x1f]
    %v101 = vld [vmem:[%s0 + $0x10] sm:$0xff]
    %v102 = vld [vmem:[%s0 + $0x18] sm:$0x1f]
    %v103 = vld [vmem:[%s0 + $0x20] sm:$0xff]
    %v104 = vld [vmem:[%s0 + $0x28] sm:$0x1f]
    %v105 = vld [vmem:[%s0 + $0x30] sm:$0xff]
    %v106 = vld [vmem:[%s0 + $0x38] sm:$0x1f]
    %v107 = vld [vmem:[%s0 + $0x40] sm:$0xff]
    %v108 = vld [vmem:[%s0 + $0x48] sm:$0x1f]
    %v109 = vld [vmem:[%s0 + $0x50] sm:$0xff]
    %v110 = vld [vmem:[%s0 + $0x58] sm:$0x1f]
    %v111 = vld [vmem:[%s0 + $0x60] sm:$0xff]
    %v112 = vld [vmem:[%s0 + $0x68] sm:$0x1f]
    %v113 = vld [vmem:[%s0 + $0x70] sm:$0xff]
    %v114 = vld [vmem:[%s0 + $0x78] sm:$0x1f]
    %vm115 = vcmask 523520
    %116 = vst.msk [vmem:[#allocation2] sm:$0xff] %vm115, %v99
    %vm117 = vcmask 520448
    %118 = vst.msk [vmem:[#allocation2 + $0x10] sm:$0x1f] %vm117, %v100
    %119 = vst.msk [vmem:[#allocation2 + $0x20] sm:$0xff] %vm115, %v101
    %120 = vst.msk [vmem:[#allocation2 + $0x30] sm:$0x1f] %vm117, %v102
    %121 = vst.msk [vmem:[#allocation2 + $0x40] sm:$0xff] %vm115, %v103
    %122 = vst.msk [vmem:[#allocation2 + $0x50] sm:$0x1f] %vm117, %v104
    %123 = vst.msk [vmem:[#allocation2 + $0x60] sm:$0xff] %vm115, %v105
    %124 = vst.msk [vmem:[#allocation2 + $0x70] sm:$0x1f] %vm117, %v106
    %125 = vst.msk [vmem:[#allocation2 + $0x80] sm:$0xff] %vm115, %v107
    %126 = vst.msk [vmem:[#allocation2 + $0x90] sm:$0x1f] %vm117, %v108
    %127 = vst.msk [vmem:[#allocation2 + $0xa0] sm:$0xff] %vm115, %v109
    %128 = vst.msk [vmem:[#allocation2 + $0xb0] sm:$0x1f] %vm117, %v110
    %129 = vst.msk [vmem:[#allocation2 + $0xc0] sm:$0xff] %vm115, %v111
    %130 = vst.msk [vmem:[#allocation2 + $0xd0] sm:$0x1f] %vm117, %v112
    %131 = vst.msk [vmem:[#allocation2 + $0xe0] sm:$0xff] %vm115, %v113
    %132 = vst.msk [vmem:[#allocation2 + $0xf0] sm:$0x1f] %vm117, %v114
    %v133 = vld [vmem:[%s0 + $0x1] sm:$0xff]
    %v134 = vld [vmem:[%s0 + $0x9] sm:$0x1f]
    %v135 = vld [vmem:[%s0 + $0x11] sm:$0xff]
    %v136 = vld [vmem:[%s0 + $0x19] sm:$0x1f]
    %v137 = vld [vmem:[%s0 + $0x21] sm:$0xff]
    %v138 = vld [vmem:[%s0 + $0x29] sm:$0x1f]
    %v139 = vld [vmem:[%s0 + $0x31] sm:$0xff]
    %v140 = vld [vmem:[%s0 + $0x39] sm:$0x1f]
    %v141 = vld [vmem:[%s0 + $0x41] sm:$0xff]
    %v142 = vld [vmem:[%s0 + $0x49] sm:$0x1f]
    %v143 = vld [vmem:[%s0 + $0x51] sm:$0xff]
    %v144 = vld [vmem:[%s0 + $0x59] sm:$0x1f]
    %v145 = vld [vmem:[%s0 + $0x61] sm:$0xff]
    %v146 = vld [vmem:[%s0 + $0x69] sm:$0x1f]
    %v147 = vld [vmem:[%s0 + $0x71] sm:$0xff]
    %v148 = vld [vmem:[%s0 + $0x79] sm:$0x1f]
    %165 = vrot.lane.b32.xlu0 %v133, 64
    %v166 = vpop.permute.xlu0 %165
    %167 = vrot.lane.b32.xlu0 %v134, 64
    %v168 = vpop.permute.xlu0 %167
    %169 = vrot.lane.b32.xlu0 %v135, 64
    %v170 = vpop.permute.xlu0 %169
    %171 = vrot.lane.b32.xlu0 %v136, 64
    %v172 = vpop.permute.xlu0 %171
    %173 = vrot.lane.b32.xlu0 %v137, 64
    %v174 = vpop.permute.xlu0 %173
    %175 = vrot.lane.b32.xlu0 %v138, 64
    %v176 = vpop.permute.xlu0 %175
    %177 = vrot.lane.b32.xlu0 %v139, 64
    %v178 = vpop.permute.xlu0 %177
    %179 = vrot.lane.b32.xlu0 %v140, 64
    %v180 = vpop.permute.xlu0 %179
    %181 = vrot.lane.b32.xlu0 %v141, 64
    %v182 = vpop.permute.xlu0 %181
    %183 = vrot.lane.b32.xlu0 %v142, 64
    %v184 = vpop.permute.xlu0 %183
    %185 = vrot.lane.b32.xlu0 %v143, 64
    %v186 = vpop.permute.xlu0 %185
    %187 = vrot.lane.b32.xlu0 %v144, 64
    %v188 = vpop.permute.xlu0 %187
    %189 = vrot.lane.b32.xlu0 %v145, 64
    %v190 = vpop.permute.xlu0 %189
    %191 = vrot.lane.b32.xlu0 %v146, 64
    %v192 = vpop.permute.xlu0 %191
    %193 = vrot.lane.b32.xlu0 %v147, 64
    %v194 = vpop.permute.xlu0 %193
    %195 = vrot.lane.b32.xlu0 %v148, 64
    %v196 = vpop.permute.xlu0 %195
    %vm213 = vcmask 785920
    %214 = vst.msk [vmem:[#allocation2] sm:$0xff] %vm213, %v166
    %vm215 = vcmask 782848
    %216 = vst.msk [vmem:[#allocation2 + $0x10] sm:$0x1f] %vm215, %v168
    %217 = vst.msk [vmem:[#allocation2 + $0x20] sm:$0xff] %vm213, %v170
    %218 = vst.msk [vmem:[#allocation2 + $0x30] sm:$0x1f] %vm215, %v172
    %219 = vst.msk [vmem:[#allocation2 + $0x40] sm:$0xff] %vm213, %v174
    %220 = vst.msk [vmem:[#allocation2 + $0x50] sm:$0x1f] %vm215, %v176
    %221 = vst.msk [vmem:[#allocation2 + $0x60] sm:$0xff] %vm213, %v178
    %222 = vst.msk [vmem:[#allocation2 + $0x70] sm:$0x1f] %vm215, %v180
    %223 = vst.msk [vmem:[#allocation2 + $0x80] sm:$0xff] %vm213, %v182
    %224 = vst.msk [vmem:[#allocation2 + $0x90] sm:$0x1f] %vm215, %v184
    %225 = vst.msk [vmem:[#allocation2 + $0xa0] sm:$0xff] %vm213, %v186
    %226 = vst.msk [vmem:[#allocation2 + $0xb0] sm:$0x1f] %vm215, %v188
    %227 = vst.msk [vmem:[#allocation2 + $0xc0] sm:$0xff] %vm213, %v190
    %228 = vst.msk [vmem:[#allocation2 + $0xd0] sm:$0x1f] %vm215, %v192
    %229 = vst.msk [vmem:[#allocation2 + $0xe0] sm:$0xff] %vm213, %v194
    %230 = vst.msk [vmem:[#allocation2 + $0xf0] sm:$0x1f] %vm215, %v196
    %v231 = vld [vmem:[%s0 + $0x1] sm:$0xff]
    %v232 = vld [vmem:[%s0 + $0x9] sm:$0x1f]
    %v233 = vld [vmem:[%s0 + $0x11] sm:$0xff]
    %v234 = vld [vmem:[%s0 + $0x19] sm:$0x1f]
    %v235 = vld [vmem:[%s0 + $0x21] sm:$0xff]
    %v236 = vld [vmem:[%s0 + $0x29] sm:$0x1f]
    %v237 = vld [vmem:[%s0 + $0x31] sm:$0xff]
    %v238 = vld [vmem:[%s0 + $0x39] sm:$0x1f]
    %v239 = vld [vmem:[%s0 + $0x41] sm:$0xff]
    %v240 = vld [vmem:[%s0 + $0x49] sm:$0x1f]
    %v241 = vld [vmem:[%s0 + $0x51] sm:$0xff]
    %v242 = vld [vmem:[%s0 + $0x59] sm:$0x1f]
    %v243 = vld [vmem:[%s0 + $0x61] sm:$0xff]
    %v244 = vld [vmem:[%s0 + $0x69] sm:$0x1f]
    %v245 = vld [vmem:[%s0 + $0x71] sm:$0xff]
    %v246 = vld [vmem:[%s0 + $0x79] sm:$0x1f]
    %263 = vrot.lane.b32.xlu0 %v231, 64
    %v264 = vpop.permute.xlu0 %263
    %265 = vrot.lane.b32.xlu0 %v232, 64
    %v266 = vpop.permute.xlu0 %265
    %267 = vrot.lane.b32.xlu0 %v233, 64
    %v268 = vpop.permute.xlu0 %267
    %269 = vrot.lane.b32.xlu0 %v234, 64
    %v270 = vpop.permute.xlu0 %269
    %271 = vrot.lane.b32.xlu0 %v235, 64
    %v272 = vpop.permute.xlu0 %271
    %273 = vrot.lane.b32.xlu0 %v236, 64
    %v274 = vpop.permute.xlu0 %273
    %275 = vrot.lane.b32.xlu0 %v237, 64
    %v276 = vpop.permute.xlu0 %275
    %277 = vrot.lane.b32.xlu0 %v238, 64
    %v278 = vpop.permute.xlu0 %277
    %279 = vrot.lane.b32.xlu0 %v239, 64
    %v280 = vpop.permute.xlu0 %279
    %281 = vrot.lane.b32.xlu0 %v240, 64
    %v282 = vpop.permute.xlu0 %281
    %283 = vrot.lane.b32.xlu0 %v241, 64
    %v284 = vpop.permute.xlu0 %283
    %285 = vrot.lane.b32.xlu0 %v242, 64
    %v286 = vpop.permute.xlu0 %285
    %287 = vrot.lane.b32.xlu0 %v243, 64
    %v288 = vpop.permute.xlu0 %287
    %289 = vrot.lane.b32.xlu0 %v244, 64
    %v290 = vpop.permute.xlu0 %289
    %291 = vrot.lane.b32.xlu0 %v245, 64
    %v292 = vpop.permute.xlu0 %291
    %293 = vrot.lane.b32.xlu0 %v246, 64
    %v294 = vpop.permute.xlu0 %293
    %vm311 = vcmask 1048320
    %312 = vst.msk [vmem:[#allocation2] sm:$0xff] %vm311, %v264
    %vm313 = vcmask 1045248
    %314 = vst.msk [vmem:[#allocation2 + $0x10] sm:$0x1f] %vm313, %v266
    %315 = vst.msk [vmem:[#allocation2 + $0x20] sm:$0xff] %vm311, %v268
    %316 = vst.msk [vmem:[#allocation2 + $0x30] sm:$0x1f] %vm313, %v270
    %317 = vst.msk [vmem:[#allocation2 + $0x40] sm:$0xff] %vm311, %v272
    %318 = vst.msk [vmem:[#allocation2 + $0x50] sm:$0x1f] %vm313, %v274
    %319 = vst.msk [vmem:[#allocation2 + $0x60] sm:$0xff] %vm311, %v276
    %320 = vst.msk [vmem:[#allocation2 + $0x70] sm:$0x1f] %vm313, %v278
    %321 = vst.msk [vmem:[#allocation2 + $0x80] sm:$0xff] %vm311, %v280
    %322 = vst.msk [vmem:[#allocation2 + $0x90] sm:$0x1f] %vm313, %v282
    %323 = vst.msk [vmem:[#allocation2 + $0xa0] sm:$0xff] %vm311, %v284
    %324 = vst.msk [vmem:[#allocation2 + $0xb0] sm:$0x1f] %vm313, %v286
    %325 = vst.msk [vmem:[#allocation2 + $0xc0] sm:$0xff] %vm311, %v288
    %326 = vst.msk [vmem:[#allocation2 + $0xd0] sm:$0x1f] %vm313, %v290
    %327 = vst.msk [vmem:[#allocation2 + $0xe0] sm:$0xff] %vm311, %v292
    %328 = vst.msk [vmem:[#allocation2 + $0xf0] sm:$0x1f] %vm313, %v294
    %v329 = vld [vmem:[%s0 + $0x2] sm:$0xff]
    %v330 = vld [vmem:[%s0 + $0xa] sm:$0x1f]
    %v331 = vld [vmem:[%s0 + $0x12] sm:$0xff]
    %v332 = vld [vmem:[%s0 + $0x1a] sm:$0x1f]
    %v333 = vld [vmem:[%s0 + $0x22] sm:$0xff]
    %v334 = vld [vmem:[%s0 + $0x2a] sm:$0x1f]
    %v335 = vld [vmem:[%s0 + $0x32] sm:$0xff]
    %v336 = vld [vmem:[%s0 + $0x3a] sm:$0x1f]
    %v337 = vld [vmem:[%s0 + $0x42] sm:$0xff]
    %v338 = vld [vmem:[%s0 + $0x4a] sm:$0x1f]
    %v339 = vld [vmem:[%s0 + $0x52] sm:$0xff]
    %v340 = vld [vmem:[%s0 + $0x5a] sm:$0x1f]
    %v341 = vld [vmem:[%s0 + $0x62] sm:$0xff]
    %v342 = vld [vmem:[%s0 + $0x6a] sm:$0x1f]
    %v343 = vld [vmem:[%s0 + $0x72] sm:$0xff]
    %v344 = vld [vmem:[%s0 + $0x7a] sm:$0x1f]
    %345 = vst.msk [vmem:[#allocation2 + $0x8] sm:$0xff] %vm81, %v329
    %346 = vst.msk [vmem:[#allocation2 + $0x18] sm:$0x1f] %vm83, %v330
    %347 = vst.msk [vmem:[#allocation2 + $0x28] sm:$0xff] %vm81, %v331
    %348 = vst.msk [vmem:[#allocation2 + $0x38] sm:$0x1f] %vm83, %v332
    %349 = vst.msk [vmem:[#allocation2 + $0x48] sm:$0xff] %vm81, %v333
    %350 = vst.msk [vmem:[#allocation2 + $0x58] sm:$0x1f] %vm83, %v334
    %351 = vst.msk [vmem:[#allocation2 + $0x68] sm:$0xff] %vm81, %v335
    %352 = vst.msk [vmem:[#allocation2 + $0x78] sm:$0x1f] %vm83, %v336
    %353 = vst.msk [vmem:[#allocation2 + $0x88] sm:$0xff] %vm81, %v337
    %354 = vst.msk [vmem:[#allocation2 + $0x98] sm:$0x1f] %vm83, %v338
    %355 = vst.msk [vmem:[#allocation2 + $0xa8] sm:$0xff] %vm81, %v339
    %356 = vst.msk [vmem:[#allocation2 + $0xb8] sm:$0x1f] %vm83, %v340
    %357 = vst.msk [vmem:[#allocation2 + $0xc8] sm:$0xff] %vm81, %v341
    %358 = vst.msk [vmem:[#allocation2 + $0xd8] sm:$0x1f] %vm83, %v342
    %359 = vst.msk [vmem:[#allocation2 + $0xe8] sm:$0xff] %vm81, %v343
    %360 = vst.msk [vmem:[#allocation2 + $0xf8] sm:$0x1f] %vm83, %v344
    %v361 = vld [vmem:[%s0 + $0x2] sm:$0xff]
    %v362 = vld [vmem:[%s0 + $0xa] sm:$0x1f]
    %v363 = vld [vmem:[%s0 + $0x12] sm:$0xff]
    %v364 = vld [vmem:[%s0 + $0x1a] sm:$0x1f]
    %v365 = vld [vmem:[%s0 + $0x22] sm:$0xff]
    %v366 = vld [vmem:[%s0 + $0x2a] sm:$0x1f]
    %v367 = vld [vmem:[%s0 + $0x32] sm:$0xff]
    %v368 = vld [vmem:[%s0 + $0x3a] sm:$0x1f]
    %v369 = vld [vmem:[%s0 + $0x42] sm:$0xff]
    %v370 = vld [vmem:[%s0 + $0x4a] sm:$0x1f]
    %v371 = vld [vmem:[%s0 + $0x52] sm:$0xff]
    %v372 = vld [vmem:[%s0 + $0x5a] sm:$0x1f]
    %v373 = vld [vmem:[%s0 + $0x62] sm:$0xff]
    %v374 = vld [vmem:[%s0 + $0x6a] sm:$0x1f]
    %v375 = vld [vmem:[%s0 + $0x72] sm:$0xff]
    %v376 = vld [vmem:[%s0 + $0x7a] sm:$0x1f]
    %377 = vst.msk [vmem:[#allocation2 + $0x8] sm:$0xff] %vm115, %v361
    %378 = vst.msk [vmem:[#allocation2 + $0x18] sm:$0x1f] %vm117, %v362
    %379 = vst.msk [vmem:[#allocation2 + $0x28] sm:$0xff] %vm115, %v363
    %380 = vst.msk [vmem:[#allocation2 + $0x38] sm:$0x1f] %vm117, %v364
    %381 = vst.msk [vmem:[#allocation2 + $0x48] sm:$0xff] %vm115, %v365
    %382 = vst.msk [vmem:[#allocation2 + $0x58] sm:$0x1f] %vm117, %v366
    %383 = vst.msk [vmem:[#allocation2 + $0x68] sm:$0xff] %vm115, %v367
    %384 = vst.msk [vmem:[#allocation2 + $0x78] sm:$0x1f] %vm117, %v368
    %385 = vst.msk [vmem:[#allocation2 + $0x88] sm:$0xff] %vm115, %v369
    %386 = vst.msk [vmem:[#allocation2 + $0x98] sm:$0x1f] %vm117, %v370
    %387 = vst.msk [vmem:[#allocation2 + $0xa8] sm:$0xff] %vm115, %v371
    %388 = vst.msk [vmem:[#allocation2 + $0xb8] sm:$0x1f] %vm117, %v372
    %389 = vst.msk [vmem:[#allocation2 + $0xc8] sm:$0xff] %vm115, %v373
    %390 = vst.msk [vmem:[#allocation2 + $0xd8] sm:$0x1f] %vm117, %v374
    %391 = vst.msk [vmem:[#allocation2 + $0xe8] sm:$0xff] %vm115, %v375
    %392 = vst.msk [vmem:[#allocation2 + $0xf8] sm:$0x1f] %vm117, %v376
    %v393 = vld [vmem:[#allocation2] sm:$0xff]
    %v394 = vld [vmem:[#allocation2 + $0x8] sm:$0xff]
    %v395 = vld [vmem:[#allocation2 + $0x10] sm:$0xff]
    %v396 = vld [vmem:[#allocation2 + $0x18] sm:$0xff]
    %v397 = vld [vmem:[#allocation2 + $0x20] sm:$0xff]
    %v398 = vld [vmem:[#allocation2 + $0x28] sm:$0xff]
    %v399 = vld [vmem:[#allocation2 + $0x30] sm:$0xff]
    %v400 = vld [vmem:[#allocation2 + $0x38] sm:$0xff]
    %v401 = vld [vmem:[#allocation2 + $0x40] sm:$0xff]
    %v402 = vld [vmem:[#allocation2 + $0x48] sm:$0xff]
    %v403 = vld [vmem:[#allocation2 + $0x50] sm:$0xff]
    %v404 = vld [vmem:[#allocation2 + $0x58] sm:$0xff]
    %v405 = vld [vmem:[#allocation2 + $0x60] sm:$0xff]
    %v406 = vld [vmem:[#allocation2 + $0x68] sm:$0xff]
    %v407 = vld [vmem:[#allocation2 + $0x70] sm:$0xff]
    %v408 = vld [vmem:[#allocation2 + $0x78] sm:$0xff]
    %v409 = vld [vmem:[#allocation2 + $0x80] sm:$0xff]
    %v410 = vld [vmem:[#allocation2 + $0x88] sm:$0xff]
    %v411 = vld [vmem:[#allocation2 + $0x90] sm:$0xff]
    %v412 = vld [vmem:[#allocation2 + $0x98] sm:$0xff]
    %v413 = vld [vmem:[#allocation2 + $0xa0] sm:$0xff]
    %v414 = vld [vmem:[#allocation2 + $0xa8] sm:$0xff]
    %v415 = vld [vmem:[#allocation2 + $0xb0] sm:$0xff]
    %v416 = vld [vmem:[#allocation2 + $0xb8] sm:$0xff]
    %v417 = vld [vmem:[#allocation2 + $0xc0] sm:$0xff]
    %v418 = vld [vmem:[#allocation2 + $0xc8] sm:$0xff]
    %v419 = vld [vmem:[#allocation2 + $0xd0] sm:$0xff]
    %v420 = vld [vmem:[#allocation2 + $0xd8] sm:$0xff]
    %v421 = vld [vmem:[#allocation2 + $0xe0] sm:$0xff]
    %v422 = vld [vmem:[#allocation2 + $0xe8] sm:$0xff]
    %v423 = vld [vmem:[#allocation2 + $0xf0] sm:$0xff]
    %v424 = vld [vmem:[#allocation2 + $0xf8] sm:$0xff]
    %v425 = vld [vmem:[#allocation3] sm:$0xff]
    %v426 = vld [vmem:[#allocation3 + $0x8] sm:$0xff]
    %v427 = vld [vmem:[#allocation3 + $0x10] sm:$0xff]
    %v428 = vld [vmem:[#allocation3 + $0x18] sm:$0xff]
    %v429 = vld [vmem:[#allocation3 + $0x20] sm:$0xff]
    %v430 = vld [vmem:[#allocation3 + $0x28] sm:$0xff]
    %v431 = vld [vmem:[#allocation3 + $0x30] sm:$0xff]
    %v432 = vld [vmem:[#allocation3 + $0x38] sm:$0xff]
    %v433 = vld [vmem:[#allocation3 + $0x40] sm:$0xff]
    %v434 = vld [vmem:[#allocation3 + $0x48] sm:$0xff]
    %v435 = vld [vmem:[#allocation3 + $0x50] sm:$0xff]
    %v436 = vld [vmem:[#allocation3 + $0x58] sm:$0xff]
    %v437 = vld [vmem:[#allocation3 + $0x60] sm:$0xff]
    %v438 = vld [vmem:[#allocation3 + $0x68] sm:$0xff]
    %v439 = vld [vmem:[#allocation3 + $0x70] sm:$0xff]
    %v440 = vld [vmem:[#allocation3 + $0x78] sm:$0xff]
    %v441 = vld [vmem:[#allocation3 + $0x80] sm:$0xff]
    %v442 = vld [vmem:[#allocation3 + $0x88] sm:$0xff]
    %v443 = vld [vmem:[#allocation3 + $0x90] sm:$0xff]
    %v444 = vld [vmem:[#allocation3 + $0x98] sm:$0xff]
    %v445 = vld [vmem:[#allocation3 + $0xa0] sm:$0xff]
    %v446 = vld [vmem:[#allocation3 + $0xa8] sm:$0xff]
    %v447 = vld [vmem:[#allocation3 + $0xb0] sm:$0xff]
    %v448 = vld [vmem:[#allocation3 + $0xb8] sm:$0xff]
    %v449 = vld [vmem:[#allocation3 + $0xc0] sm:$0xff]
    %v450 = vld [vmem:[#allocation3 + $0xc8] sm:$0xff]
    %v451 = vld [vmem:[#allocation3 + $0xd0] sm:$0xff]
    %v452 = vld [vmem:[#allocation3 + $0xd8] sm:$0xff]
    %v453 = vld [vmem:[#allocation3 + $0xe0] sm:$0xff]
    %v454 = vld [vmem:[#allocation3 + $0xe8] sm:$0xff]
    %v455 = vld [vmem:[#allocation3 + $0xf0] sm:$0xff]
    %v456 = vld [vmem:[#allocation3 + $0xf8] sm:$0xff]
    %v457 = vld [vmem:[#allocation3 + $0x100] sm:$0xff]
    %v458 = vld [vmem:[#allocation3 + $0x108] sm:$0xff]
    %v459 = vld [vmem:[#allocation3 + $0x110] sm:$0xff]
    %v460 = vld [vmem:[#allocation3 + $0x118] sm:$0xff]
    %v461 = vld [vmem:[#allocation3 + $0x120] sm:$0xff]
    %v462 = vld [vmem:[#allocation3 + $0x128] sm:$0xff]
    %v463 = vld [vmem:[#allocation3 + $0x130] sm:$0xff]
    %v464 = vld [vmem:[#allocation3 + $0x138] sm:$0xff]
    %v465 = vld [vmem:[#allocation3 + $0x140] sm:$0xff]
    %v466 = vld [vmem:[#allocation3 + $0x148] sm:$0xff]
    %v467 = vld [vmem:[#allocation3 + $0x150] sm:$0xff]
    %v468 = vld [vmem:[#allocation3 + $0x158] sm:$0xff]
    %v469 = vld [vmem:[#allocation3 + $0x160] sm:$0xff]
    %v470 = vld [vmem:[#allocation3 + $0x168] sm:$0xff]
    %v471 = vld [vmem:[#allocation3 + $0x170] sm:$0xff]
    %v472 = vld [vmem:[#allocation3 + $0x178] sm:$0xff]
    %v473 = vld [vmem:[#allocation3 + $0x180] sm:$0xff]
    %v474 = vld [vmem:[#allocation3 + $0x188] sm:$0xff]
    %v475 = vld [vmem:[#allocation3 + $0x190] sm:$0xff]
    %v476 = vld [vmem:[#allocation3 + $0x198] sm:$0xff]
    %v477 = vld [vmem:[#allocation3 + $0x1a0] sm:$0xff]
    %v478 = vld [vmem:[#allocation3 + $0x1a8] sm:$0xff]
    %v479 = vld [vmem:[#allocation3 + $0x1b0] sm:$0xff]
    %v480 = vld [vmem:[#allocation3 + $0x1b8] sm:$0xff]
    %v481 = vld [vmem:[#allocation3 + $0x1c0] sm:$0xff]
    %v482 = vld [vmem:[#allocation3 + $0x1c8] sm:$0xff]
    %v483 = vld [vmem:[#allocation3 + $0x1d0] sm:$0xff]
    %v484 = vld [vmem:[#allocation3 + $0x1d8] sm:$0xff]
    %v485 = vld [vmem:[#allocation3 + $0x1e0] sm:$0xff]
    %v486 = vld [vmem:[#allocation3 + $0x1e8] sm:$0xff]
    %v487 = vld [vmem:[#allocation3 + $0x1f0] sm:$0xff]
    %v488 = vld [vmem:[#allocation3 + $0x1f8] sm:$0xff]
    %v489 = vld [vmem:[#allocation3 + $0x200] sm:$0xff]
    %v490 = vld [vmem:[#allocation3 + $0x208] sm:$0xff]
    %v491 = vld [vmem:[#allocation3 + $0x210] sm:$0xff]
    %v492 = vld [vmem:[#allocation3 + $0x218] sm:$0xff]
    %v493 = vld [vmem:[#allocation3 + $0x220] sm:$0xff]
    %v494 = vld [vmem:[#allocation3 + $0x228] sm:$0xff]
    %v495 = vld [vmem:[#allocation3 + $0x230] sm:$0xff]
    %v496 = vld [vmem:[#allocation3 + $0x238] sm:$0xff]
    %v497 = vld [vmem:[#allocation3 + $0x240] sm:$0xff]
    %v498 = vld [vmem:[#allocation3 + $0x248] sm:$0xff]
    %v499 = vld [vmem:[#allocation3 + $0x250] sm:$0xff]
    %v500 = vld [vmem:[#allocation3 + $0x258] sm:$0xff]
    %v501 = vld [vmem:[#allocation3 + $0x260] sm:$0xff]
    %v502 = vld [vmem:[#allocation3 + $0x268] sm:$0xff]
    %v503 = vld [vmem:[#allocation3 + $0x270] sm:$0xff]
    %v504 = vld [vmem:[#allocation3 + $0x278] sm:$0xff]
    %v505 = vld [vmem:[#allocation3 + $0x280] sm:$0xff]
    %v506 = vld [vmem:[#allocation3 + $0x288] sm:$0xff]
    %v507 = vld [vmem:[#allocation3 + $0x290] sm:$0xff]
    %v508 = vld [vmem:[#allocation3 + $0x298] sm:$0xff]
    %v509 = vld [vmem:[#allocation3 + $0x2a0] sm:$0xff]
    %v510 = vld [vmem:[#allocation3 + $0x2a8] sm:$0xff]
    %v511 = vld [vmem:[#allocation3 + $0x2b0] sm:$0xff]
    %v512 = vld [vmem:[#allocation3 + $0x2b8] sm:$0xff]
    %v513 = vld [vmem:[#allocation3 + $0x2c0] sm:$0xff]
    %v514 = vld [vmem:[#allocation3 + $0x2c8] sm:$0xff]
    %v515 = vld [vmem:[#allocation3 + $0x2d0] sm:$0xff]
    %v516 = vld [vmem:[#allocation3 + $0x2d8] sm:$0xff]
    %v517 = vld [vmem:[#allocation3 + $0x2e0] sm:$0xff]
    %v518 = vld [vmem:[#allocation3 + $0x2e8] sm:$0xff]
    %v519 = vld [vmem:[#allocation3 + $0x2f0] sm:$0xff]
    %v520 = vld [vmem:[#allocation3 + $0x2f8] sm:$0xff]
    %vm521 = vcmask 523264
    %v523 = vsel %vm521, %v394, 0
    %v526 = vsel %vm521, %v396, 0
    %v529 = vsel %vm521, %v398, 0
    %v532 = vsel %vm521, %v400, 0
    %v535 = vsel %vm521, %v402, 0
    %v538 = vsel %vm521, %v404, 0
    %v541 = vsel %vm521, %v406, 0
    %v544 = vsel %vm521, %v408, 0
    %v547 = vsel %vm521, %v410, 0
    %v550 = vsel %vm521, %v412, 0
    %v553 = vsel %vm521, %v414, 0
    %v556 = vsel %vm521, %v416, 0
    %v559 = vsel %vm521, %v418, 0
    %v562 = vsel %vm521, %v420, 0
    %v565 = vsel %vm521, %v422, 0
    %v568 = vsel %vm521, %v424, 0
    %570 = vmatprep.subr.mxu0 %v426
    %571 = vmatpush1.msra.mxu0 %v425
    %572 = vmatprep.subr.mxu0 %v430
    %573 = vmatpush1.msra.mxu0 %v429
    %574 = vmatprep.subr.mxu0 %v434
    %575 = vmatpush1.msra.mxu0 %v433
    %576 = vmatprep.subr.mxu0 %v438
    %577 = vmatpush1.msra.mxu0 %v437
    %578 = vmatprep.subr.mxu0 %v442
    %579 = vmatpush1.msra.mxu0 %v441
    %580 = vmatprep.subr.mxu0 %v446
    %581 = vmatpush1.msra.mxu0 %v445
    %582 = vmatprep.subr.mxu0 %v450
    %583 = vmatpush1.msra.mxu0 %v449
    %584 = vmatprep.subr.mxu0 %v454
    %585 = vmatpush1.msra.mxu0 %v453
    %586 = vmatprep.subr.mxu0 %v458
    %587 = vmatpush1.msra.mxu0 %v457
    %588 = vmatprep.subr.mxu0 %v462
    %589 = vmatpush1.msra.mxu0 %v461
    %590 = vmatprep.subr.mxu0 %v466
    %591 = vmatpush1.msra.mxu0 %v465
    %592 = vmatprep.subr.mxu0 %v470
    %593 = vmatpush1.msra.mxu0 %v469
    %594 = vmatprep.subr.mxu0 %v474
    %595 = vmatpush1.msra.mxu0 %v473
    %596 = vmatprep.subr.mxu0 %v478
    %597 = vmatpush1.msra.mxu0 %v477
    %598 = vmatprep.subr.mxu0 %v482
    %599 = vmatpush1.msra.mxu0 %v481
    %600 = vmatprep.subr.mxu0 %v486
    %601 = vmatpush1.msra.mxu0 %v485
    %602 = vmatprep.subr.mxu0 %v490
    %603 = vmatpush1.msra.mxu0 %v489
    %604 = vmatprep.subr.mxu0 %v494
    %605 = vmatpush1.msra.mxu0 %v493
    %606 = vmatprep.subr.mxu0 %v498
    %607 = vmatpush1.msra.mxu0 %v497
    %608 = vmatprep.subr.mxu0 %v502
    %609 = vmatpush1.msra.mxu0 %v501
    %610 = vmatprep.subr.mxu0 %v506
    %611 = vmatpush1.msra.mxu0 %v505
    %612 = vmatprep.subr.mxu0 %v510
    %613 = vmatpush1.msra.mxu0 %v509
    %614 = vmatprep.subr.mxu0 %v514
    %615 = vmatpush1.msra.mxu0 %v513
    %616 = vmatprep.subr.mxu0 %v518
    %617 = vmatpush1.msra.mxu0 %v517
    %618 = vmatprep.subr.mxu0 0.0
    %619 = vmatpush1.msra.mxu0 0.0
    %620 = vmatprep.subr.mxu0 0.0
    %621 = vmatpush1.msra.mxu0 0.0
    %622 = vmatprep.subr.mxu0 0.0
    %623 = vmatpush1.msra.mxu0 0.0
    %624 = vmatprep.subr.mxu0 0.0
    %625 = vmatpush1.msra.mxu0 0.0
    %626 = vmatprep.subr.mxu0 0.0
    %627 = vmatpush1.msra.mxu0 0.0
    %628 = vmatprep.subr.mxu0 0.0
    %629 = vmatpush1.msra.mxu0 0.0
    %630 = vmatprep.subr.mxu0 0.0
    %631 = vmatpush1.msra.mxu0 0.0
    %632 = vmatprep.subr.mxu0 0.0
    %633 = vmatpush1.msra.mxu0 0.0
    %634 = vmatprep.mubr.f32.mxu0 %v523
    %635 = vmatmul.mubr.f32.gmra.mrb[0].mxu0 %v393
    %v636 = vpop.f32.mrb[0].mxu0
    %v637 = vadd.f32 0.0, %v636
    %v638 = vpop.f32.mrb[0].mxu0
    %v639 = vadd.f32 0.0, %v638
    %640 = vmatprep.mubr.f32.mxu0 %v526
    %641 = vmatmul.mubr.f32.gmra.mrb[0].mxu0 %v395
    %v642 = vpop.f32.mrb[0].mxu0
    %v643 = vadd.f32 0.0, %v642
    %v644 = vpop.f32.mrb[0].mxu0
    %v645 = vadd.f32 0.0, %v644
    %646 = vmatprep.mubr.f32.mxu0 %v529
    %647 = vmatmul.mubr.f32.gmra.mrb[0].mxu0 %v397
    %v648 = vpop.f32.mrb[0].mxu0
    %v649 = vadd.f32 0.0, %v648
    %v650 = vpop.f32.mrb[0].mxu0
    %v651 = vadd.f32 0.0, %v650
    %652 = vmatprep.mubr.f32.mxu0 %v532
    %653 = vmatmul.mubr.f32.gmra.mrb[0].mxu0 %v399
    %v654 = vpop.f32.mrb[0].mxu0
    %v655 = vadd.f32 0.0, %v654
    %v656 = vpop.f32.mrb[0].mxu0
    %v657 = vadd.f32 0.0, %v656
    %658 = vmatprep.mubr.f32.mxu0 %v535
    %659 = vmatmul.mubr.f32.gmra.mrb[0].mxu0 %v401
    %v660 = vpop.f32.mrb[0].mxu0
    %v661 = vadd.f32 0.0, %v660
    %v662 = vpop.f32.mrb[0].mxu0
    %v663 = vadd.f32 0.0, %v662
    %664 = vmatprep.mubr.f32.mxu0 %v538
    %665 = vmatmul.mubr.f32.gmra.mrb[0].mxu0 %v403
    %v666 = vpop.f32.mrb[0].mxu0
    %v667 = vadd.f32 0.0, %v666
    %v668 = vpop.f32.mrb[0].mxu0
    %v669 = vadd.f32 0.0, %v668
    %670 = vmatprep.mubr.f32.mxu0 %v541
    %671 = vmatmul.mubr.f32.gmra.mrb[0].mxu0 %v405
    %v672 = vpop.f32.mrb[0].mxu0
    %v673 = vadd.f32 0.0, %v672
    %v674 = vpop.f32.mrb[0].mxu0
    %v675 = vadd.f32 0.0, %v674
    %676 = vmatprep.mubr.f32.mxu0 %v544
    %677 = vmatmul.mubr.f32.gmra.mrb[0].mxu0 %v407
    %v678 = vpop.f32.mrb[0].mxu0
    %v679 = vadd.f32 0.0, %v678
    %v680 = vpop.f32.mrb[0].mxu0
    %v681 = vadd.f32 0.0, %v680
    %682 = vmatprep.mubr.f32.mxu0 %v547
    %683 = vmatmul.mubr.f32.gmra.mrb[0].mxu0 %v409
    %v684 = vpop.f32.mrb[0].mxu0
    %v685 = vadd.f32 0.0, %v684
    %v686 = vpop.f32.mrb[0].mxu0
    %v687 = vadd.f32 0.0, %v686
    %688 = vmatprep.mubr.f32.mxu0 %v550
    %689 = vmatmul.mubr.f32.gmra.mrb[0].mxu0 %v411
    %v690 = vpop.f32.mrb[0].mxu0
    %v691 = vadd.f32 0.0, %v690
    %v692 = vpop.f32.mrb[0].mxu0
    %v693 = vadd.f32 0.0, %v692
    %694 = vmatprep.mubr.f32.mxu0 %v553
    %695 = vmatmul.mubr.f32.gmra.mrb[0].mxu0 %v413
    %v696 = vpop.f32.mrb[0].mxu0
    %v697 = vadd.f32 0.0, %v696
    %v698 = vpop.f32.mrb[0].mxu0
    %v699 = vadd.f32 0.0, %v698
    %700 = vmatprep.mubr.f32.mxu0 %v556
    %701 = vmatmul.mubr.f32.gmra.mrb[0].mxu0 %v415
    %v702 = vpop.f32.mrb[0].mxu0
    %v703 = vadd.f32 0.0, %v702
    %v704 = vpop.f32.mrb[0].mxu0
    %v705 = vadd.f32 0.0, %v704
    %706 = vmatprep.mubr.f32.mxu0 %v559
    %707 = vmatmul.mubr.f32.gmra.mrb[0].mxu0 %v417
    %v708 = vpop.f32.mrb[0].mxu0
    %v709 = vadd.f32 0.0, %v708
    %v710 = vpop.f32.mrb[0].mxu0
    %v711 = vadd.f32 0.0, %v710
    %712 = vmatprep.mubr.f32.mxu0 %v562
    %713 = vmatmul.mubr.f32.gmra.mrb[0].mxu0 %v419
    %v714 = vpop.f32.mrb[0].mxu0
    %v715 = vadd.f32 0.0, %v714
    %v716 = vpop.f32.mrb[0].mxu0
    %v717 = vadd.f32 0.0, %v716
    %718 = vmatprep.mubr.f32.mxu0 %v565
    %719 = vmatmul.mubr.f32.gmra.mrb[0].mxu0 %v421
    %v720 = vpop.f32.mrb[0].mxu0
    %v721 = vadd.f32 0.0, %v720
    %v722 = vpop.f32.mrb[0].mxu0
    %v723 = vadd.f32 0.0, %v722
    %724 = vmatprep.mubr.f32.mxu0 %v568
    %725 = vmatmul.mubr.f32.gmra.mrb[0].mxu0 %v423
    %v726 = vpop.f32.mrb[0].mxu0
    %v727 = vadd.f32 0.0, %v726
    %v728 = vpop.f32.mrb[0].mxu0
    %v729 = vadd.f32 0.0, %v728
    %730 = vdwg.mxu0
    %731 = vmatprep.subr.mxu0 %v428
    %732 = vmatpush1.msra.mxu0 %v427
    %733 = vmatprep.subr.mxu0 %v432
    %734 = vmatpush1.msra.mxu0 %v431
    %735 = vmatprep.subr.mxu0 %v436
    %736 = vmatpush1.msra.mxu0 %v435
    %737 = vmatprep.subr.mxu0 %v440
    %738 = vmatpush1.msra.mxu0 %v439
    %739 = vmatprep.subr.mxu0 %v444
    %740 = vmatpush1.msra.mxu0 %v443
    %741 = vmatprep.subr.mxu0 %v448
    %742 = vmatpush1.msra.mxu0 %v447
    %743 = vmatprep.subr.mxu0 %v452
    %744 = vmatpush1.msra.mxu0 %v451
    %745 = vmatprep.subr.mxu0 %v456
    %746 = vmatpush1.msra.mxu0 %v455
    %747 = vmatprep.subr.mxu0 %v460
    %748 = vmatpush1.msra.mxu0 %v459
    %749 = vmatprep.subr.mxu0 %v464
    %750 = vmatpush1.msra.mxu0 %v463
    %751 = vmatprep.subr.mxu0 %v468
    %752 = vmatpush1.msra.mxu0 %v467
    %753 = vmatprep.subr.mxu0 %v472
    %754 = vmatpush1.msra.mxu0 %v471
    %755 = vmatprep.subr.mxu0 %v476
    %756 = vmatpush1.msra.mxu0 %v475
    %757 = vmatprep.subr.mxu0 %v480
    %758 = vmatpush1.msra.mxu0 %v479
    %759 = vmatprep.subr.mxu0 %v484
    %760 = vmatpush1.msra.mxu0 %v483
    %761 = vmatprep.subr.mxu0 %v488
    %762 = vmatpush1.msra.mxu0 %v487
    %763 = vmatprep.subr.mxu0 %v492
    %764 = vmatpush1.msra.mxu0 %v491
    %765 = vmatprep.subr.mxu0 %v496
    %766 = vmatpush1.msra.mxu0 %v495
    %767 = vmatprep.subr.mxu0 %v500
    %768 = vmatpush1.msra.mxu0 %v499
    %769 = vmatprep.subr.mxu0 %v504
    %770 = vmatpush1.msra.mxu0 %v503
    %771 = vmatprep.subr.mxu0 %v508
    %772 = vmatpush1.msra.mxu0 %v507
    %773 = vmatprep.subr.mxu0 %v512
    %774 = vmatpush1.msra.mxu0 %v511
    %775 = vmatprep.subr.mxu0 %v516
    %776 = vmatpush1.msra.mxu0 %v515
    %777 = vmatprep.subr.mxu0 %v520
    %778 = vmatpush1.msra.mxu0 %v519
    %779 = vmatprep.subr.mxu0 0.0
    %780 = vmatpush1.msra.mxu0 0.0
    %781 = vmatprep.subr.mxu0 0.0
    %782 = vmatpush1.msra.mxu0 0.0
    %783 = vmatprep.subr.mxu0 0.0
    %784 = vmatpush1.msra.mxu0 0.0
    %785 = vmatprep.subr.mxu0 0.0
    %786 = vmatpush1.msra.mxu0 0.0
    %787 = vmatprep.subr.mxu0 0.0
    %788 = vmatpush1.msra.mxu0 0.0
    %789 = vmatprep.subr.mxu0 0.0
    %790 = vmatpush1.msra.mxu0 0.0
    %791 = vmatprep.subr.mxu0 0.0
    %792 = vmatpush1.msra.mxu0 0.0
    %793 = vmatprep.subr.mxu0 0.0
    %794 = vmatpush1.msra.mxu0 0.0
    %795 = vmatprep.mubr.f32.mxu0 %v523
    %796 = vmatmul.mubr.f32.gmra.mrb[0].mxu0 %v393
    %v797 = vpop.f32.mrb[0].mxu0
    %v798 = vadd.f32 0.0, %v797
    %v799 = vpop.f32.mrb[0].mxu0
    %v800 = vadd.f32 0.0, %v799
    %801 = vmatprep.mubr.f32.mxu0 %v526
    %802 = vmatmul.mubr.f32.gmra.mrb[0].mxu0 %v395
    %v803 = vpop.f32.mrb[0].mxu0
    %v804 = vadd.f32 0.0, %v803
    %v805 = vpop.f32.mrb[0].mxu0
    %v806 = vadd.f32 0.0, %v805
    %807 = vmatprep.mubr.f32.mxu0 %v529
    %808 = vmatmul.mubr.f32.gmra.mrb[0].mxu0 %v397
    %v809 = vpop.f32.mrb[0].mxu0
    %v810 = vadd.f32 0.0, %v809
    %v811 = vpop.f32.mrb[0].mxu0
    %v812 = vadd.f32 0.0, %v811
    %813 = vmatprep.mubr.f32.mxu0 %v532
    %814 = vmatmul.mubr.f32.gmra.mrb[0].mxu0 %v399
    %v815 = vpop.f32.mrb[0].mxu0
    %v816 = vadd.f32 0.0, %v815
    %v817 = vpop.f32.mrb[0].mxu0
    %v818 = vadd.f32 0.0, %v817
    %819 = vmatprep.mubr.f32.mxu0 %v535
    %820 = vmatmul.mubr.f32.gmra.mrb[0].mxu0 %v401
    %v821 = vpop.f32.mrb[0].mxu0
    %v822 = vadd.f32 0.0, %v821
    %v823 = vpop.f32.mrb[0].mxu0
    %v824 = vadd.f32 0.0, %v823
    %825 = vmatprep.mubr.f32.mxu0 %v538
    %826 = vmatmul.mubr.f32.gmra.mrb[0].mxu0 %v403
    %v827 = vpop.f32.mrb[0].mxu0
    %v828 = vadd.f32 0.0, %v827
    %v829 = vpop.f32.mrb[0].mxu0
    %v830 = vadd.f32 0.0, %v829
    %831 = vmatprep.mubr.f32.mxu0 %v541
    %832 = vmatmul.mubr.f32.gmra.mrb[0].mxu0 %v405
    %v833 = vpop.f32.mrb[0].mxu0
    %v834 = vadd.f32 0.0, %v833
    %v835 = vpop.f32.mrb[0].mxu0
    %v836 = vadd.f32 0.0, %v835
    %837 = vmatprep.mubr.f32.mxu0 %v544
    %838 = vmatmul.mubr.f32.gmra.mrb[0].mxu0 %v407
    %v839 = vpop.f32.mrb[0].mxu0
    %v840 = vadd.f32 0.0, %v839
    %v841 = vpop.f32.mrb[0].mxu0
    %v842 = vadd.f32 0.0, %v841
    %843 = vmatprep.mubr.f32.mxu0 %v547
    %844 = vmatmul.mubr.f32.gmra.mrb[0].mxu0 %v409
    %v845 = vpop.f32.mrb[0].mxu0
    %v846 = vadd.f32 0.0, %v845
    %v847 = vpop.f32.mrb[0].mxu0
    %v848 = vadd.f32 0.0, %v847
    %849 = vmatprep.mubr.f32.mxu0 %v550
    %850 = vmatmul.mubr.f32.gmra.mrb[0].mxu0 %v411
    %v851 = vpop.f32.mrb[0].mxu0
    %v852 = vadd.f32 0.0, %v851
    %v853 = vpop.f32.mrb[0].mxu0
    %v854 = vadd.f32 0.0, %v853
    %855 = vmatprep.mubr.f32.mxu0 %v553
    %856 = vmatmul.mubr.f32.gmra.mrb[0].mxu0 %v413
    %v857 = vpop.f32.mrb[0].mxu0
    %v858 = vadd.f32 0.0, %v857
    %v859 = vpop.f32.mrb[0].mxu0
    %v860 = vadd.f32 0.0, %v859
    %861 = vmatprep.mubr.f32.mxu0 %v556
    %862 = vmatmul.mubr.f32.gmra.mrb[0].mxu0 %v415
    %v863 = vpop.f32.mrb[0].mxu0
    %v864 = vadd.f32 0.0, %v863
    %v865 = vpop.f32.mrb[0].mxu0
    %v866 = vadd.f32 0.0, %v865
    %867 = vmatprep.mubr.f32.mxu0 %v559
    %868 = vmatmul.mubr.f32.gmra.mrb[0].mxu0 %v417
    %v869 = vpop.f32.mrb[0].mxu0
    %v870 = vadd.f32 0.0, %v869
    %v871 = vpop.f32.mrb[0].mxu0
    %v872 = vadd.f32 0.0, %v871
    %873 = vmatprep.mubr.f32.mxu0 %v562
    %874 = vmatmul.mubr.f32.gmra.mrb[0].mxu0 %v419
    %v875 = vpop.f32.mrb[0].mxu0
    %v876 = vadd.f32 0.0, %v875
    %v877 = vpop.f32.mrb[0].mxu0
    %v878 = vadd.f32 0.0, %v877
    %879 = vmatprep.mubr.f32.mxu0 %v565
    %880 = vmatmul.mubr.f32.gmra.mrb[0].mxu0 %v421
    %v881 = vpop.f32.mrb[0].mxu0
    %v882 = vadd.f32 0.0, %v881
    %v883 = vpop.f32.mrb[0].mxu0
    %v884 = vadd.f32 0.0, %v883
    %885 = vmatprep.mubr.f32.mxu0 %v568
    %886 = vmatmul.mubr.f32.gmra.mrb[0].mxu0 %v423
    %v887 = vpop.f32.mrb[0].mxu0
    %v888 = vadd.f32 0.0, %v887
    %v889 = vpop.f32.mrb[0].mxu0
    %v890 = vadd.f32 0.0, %v889
    %891 = vdwg.mxu0
    %v892 = vmax.f32 %v637, %v639
    %v893 = vmax.f32 %v643, %v645
    %v894 = vmax.f32 %v649, %v651
    %v895 = vmax.f32 %v655, %v657
    %v896 = vmax.f32 %v661, %v663
    %v897 = vmax.f32 %v667, %v669
    %v898 = vmax.f32 %v673, %v675
    %v899 = vmax.f32 %v679, %v681
    %v900 = vmax.f32 %v685, %v687
    %v901 = vmax.f32 %v691, %v693
    %v902 = vmax.f32 %v697, %v699
    %v903 = vmax.f32 %v703, %v705
    %v904 = vmax.f32 %v709, %v711
    %v905 = vmax.f32 %v715, %v717
    %v906 = vmax.f32 %v721, %v723
    %v907 = vmax.f32 %v727, %v729
    %v908 = vmax.f32 %v798, %v800
    %v909 = vmax.f32 %v804, %v806
    %v910 = vmax.f32 %v810, %v812
    %v911 = vmax.f32 %v816, %v818
    %v912 = vmax.f32 %v822, %v824
    %v913 = vmax.f32 %v828, %v830
    %v914 = vmax.f32 %v834, %v836
    %v915 = vmax.f32 %v840, %v842
    %v916 = vmax.f32 %v846, %v848
    %v917 = vmax.f32 %v852, %v854
    %v918 = vmax.f32 %v858, %v860
    %v919 = vmax.f32 %v864, %v866
    %v920 = vmax.f32 %v870, %v872
    %v921 = vmax.f32 %v876, %v878
    %v922 = vmax.f32 %v882, %v884
    %v923 = vmax.f32 %v888, %v890
    %v924 = vmax.f32 %v892, %v908
    %v925 = vmax.f32 %v893, %v909
    %v926 = vmax.f32 %v894, %v910
    %v927 = vmax.f32 %v895, %v911
    %v928 = vmax.f32 %v896, %v912
    %v929 = vmax.f32 %v897, %v913
    %v930 = vmax.f32 %v898, %v914
    %v931 = vmax.f32 %v899, %v915
    %v932 = vmax.f32 %v900, %v916
    %v933 = vmax.f32 %v901, %v917
    %v934 = vmax.f32 %v902, %v918
    %v935 = vmax.f32 %v903, %v919
    %v936 = vmax.f32 %v904, %v920
    %v937 = vmax.f32 %v905, %v921
    %v938 = vmax.f32 %v906, %v922
    %v939 = vmax.f32 %v907, %v923
    %v940 = vld [vmem:[%s2] sm:$0x1]
    %v942 = vlaneseq
    %v943 = vshrl.u32 %v942, 7
    %v944 = vsub.s32 0, %v943
    %v945 = vrot.slane %v940, %v944
    %v947 = vadd.f32 %v924, %v945
    %v948 = vadd.f32 %v925, %v945
    %v949 = vadd.f32 %v926, %v945
    %v950 = vadd.f32 %v927, %v945
    %v951 = vadd.f32 %v928, %v945
    %v952 = vadd.f32 %v929, %v945
    %v953 = vadd.f32 %v930, %v945
    %v954 = vadd.f32 %v931, %v945
    %v955 = vadd.f32 %v932, %v945
    %v956 = vadd.f32 %v933, %v945
    %v957 = vadd.f32 %v934, %v945
    %v958 = vadd.f32 %v935, %v945
    %v959 = vadd.f32 %v936, %v945
    %v960 = vadd.f32 %v937, %v945
    %v961 = vadd.f32 %v938, %v945
    %v962 = vadd.f32 %v939, %v945
    %v963 = vmax.f32 %v947, 0.0
    %v964 = vmax.f32 %v948, 0.0
    %v965 = vmax.f32 %v949, 0.0
    %v966 = vmax.f32 %v950, 0.0
    %v967 = vmax.f32 %v951, 0.0
    %v968 = vmax.f32 %v952, 0.0
    %v969 = vmax.f32 %v953, 0.0
    %v970 = vmax.f32 %v954, 0.0
    %v971 = vmax.f32 %v955, 0.0
    %v972 = vmax.f32 %v956, 0.0
    %v973 = vmax.f32 %v957, 0.0
    %v974 = vmax.f32 %v958, 0.0
    %v975 = vmax.f32 %v959, 0.0
    %v976 = vmax.f32 %v960, 0.0
    %v977 = vmax.f32 %v961, 0.0
    %v978 = vmax.f32 %v962, 0.0
    %v979 = vld [vmem:[#allocation5] sm:$0xff]
    %v980 = vld [vmem:[#allocation5 + $0x8] sm:$0xff]
    %v981 = vld [vmem:[#allocation5 + $0x10] sm:$0xff]
    %v982 = vld [vmem:[#allocation5 + $0x18] sm:$0xff]
    %v983 = vld [vmem:[#allocation5 + $0x20] sm:$0xff]
    %v984 = vld [vmem:[#allocation5 + $0x28] sm:$0xff]
    %v985 = vld [vmem:[#allocation5 + $0x30] sm:$0xff]
    %v986 = vld [vmem:[#allocation5 + $0x38] sm:$0xff]
    %v987 = vld [vmem:[#allocation5 + $0x40] sm:$0xff]
    %v988 = vld [vmem:[#allocation5 + $0x48] sm:$0xff]
    %v989 = vld [vmem:[#allocation5 + $0x50] sm:$0xff]
    %v990 = vld [vmem:[#allocation5 + $0x58] sm:$0xff]
    %v991 = vld [vmem:[#allocation5 + $0x60] sm:$0xff]
    %v992 = vld [vmem:[#allocation5 + $0x68] sm:$0xff]
    %v993 = vld [vmem:[#allocation5 + $0x70] sm:$0xff]
    %v994 = vld [vmem:[#allocation5 + $0x78] sm:$0xff]
    %s995 = scalar_lea.vmem [#allocation5], 128
    %v996 = vld [vmem:[%s995] sm:$0xff]
    %v997 = vld [vmem:[%s995 + $0x8] sm:$0xff]
    %v998 = vld [vmem:[%s995 + $0x10] sm:$0xff]
    %v999 = vld [vmem:[%s995 + $0x18] sm:$0xff]
    %v1000 = vld [vmem:[%s995 + $0x20] sm:$0xff]
    %v1001 = vld [vmem:[%s995 + $0x28] sm:$0xff]
    %v1002 = vld [vmem:[%s995 + $0x30] sm:$0xff]
    %v1003 = vld [vmem:[%s995 + $0x38] sm:$0xff]
    %v1004 = vld [vmem:[%s995 + $0x40] sm:$0xff]
    %v1005 = vld [vmem:[%s995 + $0x48] sm:$0xff]
    %v1006 = vld [vmem:[%s995 + $0x50] sm:$0xff]
    %v1007 = vld [vmem:[%s995 + $0x58] sm:$0xff]
    %v1008 = vld [vmem:[%s995 + $0x60] sm:$0xff]
    %v1009 = vld [vmem:[%s995 + $0x68] sm:$0xff]
    %v1010 = vld [vmem:[%s995 + $0x70] sm:$0xff]
    %v1011 = vld [vmem:[%s995 + $0x78] sm:$0xff]
    %v1020 = vrot.slane %v963, 1
    %vm1021 = vcmask 1041409
    %v1022 = vsel %vm1021, %v965, %v1020
    %v1023 = vrot.slane %v967, 7
    %vm1024 = vcmask 1042434
    %v1025 = vsel %vm1024, %v1023, %v1022
    %v1026 = vrot.slane %v969, 6
    %vm1027 = vcmask 1043459
    %v1028 = vsel %vm1027, %v1026, %v1025
    %v1029 = vrot.slane %v971, 5
    %vm1030 = vcmask 1044484
    %v1031 = vsel %vm1030, %v1029, %v1028
    %v1032 = vrot.slane %v973, 4
    %vm1033 = vcmask 1045509
    %v1034 = vsel %vm1033, %v1032, %v1031
    %v1035 = vrot.slane %v975, 3
    %vm1036 = vcmask 1046534
    %v1037 = vsel %vm1036, %v1035, %v1034
    %v1038 = vrot.slane %v977, 2
    %vm1039 = vcmask 1047559
    %v1040 = vsel %vm1039, %v1038, %v1037
    %1042 = vmatprep.subr.mxu0 0.0
    %1043 = vmatpush1.msra.mxu0 %v996
    %1044 = vmatprep.subr.mxu0 0.0
    %1045 = vmatpush1.msra.mxu0 %v997
    %1046 = vmatprep.subr.mxu0 0.0
    %1047 = vmatpush1.msra.mxu0 %v998
    %1048 = vmatprep.subr.mxu0 0.0
    %1049 = vmatpush1.msra.mxu0 %v999
    %1050 = vmatprep.subr.mxu0 0.0
    %1051 = vmatpush1.msra.mxu0 %v1000
    %1052 = vmatprep.subr.mxu0 0.0
    %1053 = vmatpush1.msra.mxu0 %v1001
    %1054 = vmatprep.subr.mxu0 0.0
    %1055 = vmatpush1.msra.mxu0 %v1002
    %1056 = vmatprep.subr.mxu0 0.0
    %1057 = vmatpush1.msra.mxu0 %v1003
    %1058 = vmatprep.subr.mxu0 0.0
    %1059 = vmatpush1.msra.mxu0 %v1004
    %1060 = vmatprep.subr.mxu0 0.0
    %1061 = vmatpush1.msra.mxu0 %v1005
    %1062 = vmatprep.subr.mxu0 0.0
    %1063 = vmatpush1.msra.mxu0 %v1006
    %1064 = vmatprep.subr.mxu0 0.0
    %1065 = vmatpush1.msra.mxu0 %v1007
    %1066 = vmatprep.subr.mxu0 0.0
    %1067 = vmatpush1.msra.mxu0 %v1008
    %1068 = vmatprep.subr.mxu0 0.0
    %1069 = vmatpush1.msra.mxu0 %v1009
    %1070 = vmatprep.subr.mxu0 0.0
    %1071 = vmatpush1.msra.mxu0 %v1010
    %1072 = vmatprep.subr.mxu0 0.0
    %1073 = vmatpush1.msra.mxu0 %v1011
    %1074 = vmatprep.subr.mxu0 0.0
    %1075 = vmatpush1.msra.mxu0 0.0
    %1076 = vmatprep.subr.mxu0 0.0
    %1077 = vmatpush1.msra.mxu0 0.0
    %1078 = vmatprep.subr.mxu0 0.0
    %1079 = vmatpush1.msra.mxu0 0.0
    %1080 = vmatprep.subr.mxu0 0.0
    %1081 = vmatpush1.msra.mxu0 0.0
    %1082 = vmatprep.subr.mxu0 0.0
    %1083 = vmatpush1.msra.mxu0 0.0
    %1084 = vmatprep.subr.mxu0 0.0
    %1085 = vmatpush1.msra.mxu0 0.0
    %1086 = vmatprep.subr.mxu0 0.0
    %1087 = vmatpush1.msra.mxu0 0.0
    %1088 = vmatprep.subr.mxu0 0.0
    %1089 = vmatpush1.msra.mxu0 0.0
    %1090 = vmatprep.subr.mxu0 0.0
    %1091 = vmatpush1.msra.mxu0 0.0
    %1092 = vmatprep.subr.mxu0 0.0
    %1093 = vmatpush1.msra.mxu0 0.0
    %1094 = vmatprep.subr.mxu0 0.0
    %1095 = vmatpush1.msra.mxu0 0.0
    %1096 = vmatprep.subr.mxu0 0.0
    %1097 = vmatpush1.msra.mxu0 0.0
    %1098 = vmatprep.subr.mxu0 0.0
    %1099 = vmatpush1.msra.mxu0 0.0
    %1100 = vmatprep.subr.mxu0 0.0
    %1101 = vmatpush1.msra.mxu0 0.0
    %1102 = vmatprep.subr.mxu0 0.0
    %1103 = vmatpush1.msra.mxu0 0.0
    %1104 = vmatprep.subr.mxu0 0.0
    %1105 = vmatpush1.msra.mxu0 0.0
    %1106 = vmatprep.mubr.f32.mxu0 0.0
    %1107 = vmatmul.mubr.f32.gmra.mrb[0].mxu0 %v1040
    %v1108 = vpop.f32.mrb[0].mxu0
    %v1109 = vadd.f32 0.0, %v1108
    %v1110 = vpop.f32.mrb[0].mxu0
    %1111 = vdwg.mxu0
    %v1112 = vrot.slane %v965, 7
    %v1113 = vsel %vm1021, %v1112, %v963
    %v1114 = vrot.slane %v967, 6
    %v1115 = vsel %vm1024, %v1114, %v1113
    %v1116 = vrot.slane %v969, 5
    %v1117 = vsel %vm1027, %v1116, %v1115
    %v1118 = vrot.slane %v971, 4
    %v1119 = vsel %vm1030, %v1118, %v1117
    %v1120 = vrot.slane %v973, 3
    %v1121 = vsel %vm1033, %v1120, %v1119
    %v1122 = vrot.slane %v975, 2
    %v1123 = vsel %vm1036, %v1122, %v1121
    %v1124 = vrot.slane %v977, 1
    %v1125 = vsel %vm1039, %v1124, %v1123
    %1127 = vmatprep.subr.mxu0 0.0
    %1128 = vmatpush1.msra.mxu0 %v979
    %1129 = vmatprep.subr.mxu0 0.0
    %1130 = vmatpush1.msra.mxu0 %v980
    %1131 = vmatprep.subr.mxu0 0.0
    %1132 = vmatpush1.msra.mxu0 %v981
    %1133 = vmatprep.subr.mxu0 0.0
    %1134 = vmatpush1.msra.mxu0 %v982
    %1135 = vmatprep.subr.mxu0 0.0
    %1136 = vmatpush1.msra.mxu0 %v983
    %1137 = vmatprep.subr.mxu0 0.0
    %1138 = vmatpush1.msra.mxu0 %v984
    %1139 = vmatprep.subr.mxu0 0.0
    %1140 = vmatpush1.msra.mxu0 %v985
    %1141 = vmatprep.subr.mxu0 0.0
    %1142 = vmatpush1.msra.mxu0 %v986
    %1143 = vmatprep.subr.mxu0 0.0
    %1144 = vmatpush1.msra.mxu0 %v987
    %1145 = vmatprep.subr.mxu0 0.0
    %1146 = vmatpush1.msra.mxu0 %v988
    %1147 = vmatprep.subr.mxu0 0.0
    %1148 = vmatpush1.msra.mxu0 %v989
    %1149 = vmatprep.subr.mxu0 0.0
    %1150 = vmatpush1.msra.mxu0 %v990
    %1151 = vmatprep.subr.mxu0 0.0
    %1152 = vmatpush1.msra.mxu0 %v991
    %1153 = vmatprep.subr.mxu0 0.0
    %1154 = vmatpush1.msra.mxu0 %v992
    %1155 = vmatprep.subr.mxu0 0.0
    %1156 = vmatpush1.msra.mxu0 %v993
    %1157 = vmatprep.subr.mxu0 0.0
    %1158 = vmatpush1.msra.mxu0 %v994
    %1159 = vmatprep.subr.mxu0 0.0
    %1160 = vmatpush1.msra.mxu0 0.0
    %1161 = vmatprep.subr.mxu0 0.0
    %1162 = vmatpush1.msra.mxu0 0.0
    %1163 = vmatprep.subr.mxu0 0.0
    %1164 = vmatpush1.msra.mxu0 0.0
    %1165 = vmatprep.subr.mxu0 0.0
    %1166 = vmatpush1.msra.mxu0 0.0
    %1167 = vmatprep.subr.mxu0 0.0
    %1168 = vmatpush1.msra.mxu0 0.0
    %1169 = vmatprep.subr.mxu0 0.0
    %1170 = vmatpush1.msra.mxu0 0.0
    %1171 = vmatprep.subr.mxu0 0.0
    %1172 = vmatpush1.msra.mxu0 0.0
    %1173 = vmatprep.subr.mxu0 0.0
    %1174 = vmatpush1.msra.mxu0 0.0
    %1175 = vmatprep.subr.mxu0 0.0
    %1176 = vmatpush1.msra.mxu0 0.0
    %1177 = vmatprep.subr.mxu0 0.0
    %1178 = vmatpush1.msra.mxu0 0.0
    %1179 = vmatprep.subr.mxu0 0.0
    %1180 = vmatpush1.msra.mxu0 0.0
    %1181 = vmatprep.subr.mxu0 0.0
    %1182 = vmatpush1.msra.mxu0 0.0
    %1183 = vmatprep.subr.mxu0 0.0
    %1184 = vmatpush1.msra.mxu0 0.0
    %1185 = vmatprep.subr.mxu0 0.0
    %1186 = vmatpush1.msra.mxu0 0.0
    %1187 = vmatprep.subr.mxu0 0.0
    %1188 = vmatpush1.msra.mxu0 0.0
    %1189 = vmatprep.subr.mxu0 0.0
    %1190 = vmatpush1.msra.mxu0 0.0
    %1191 = vmatprep.mubr.f32.mxu0 0.0
    %1192 = vmatmul.mubr.f32.gmra.mrb[0].mxu0 %v1125
    %v1193 = vpop.f32.mrb[0].mxu0
    %v1194 = vadd.f32 %v1109, %v1193
    %v1195 = vpop.f32.mrb[0].mxu0
    %1196 = vdwg.mxu0
    %s1197 = scalar_lea.vmem [#allocation5], 256
    %v1198 = vld [vmem:[%s1197] sm:$0xff]
    %v1199 = vld [vmem:[%s1197 + $0x8] sm:$0xff]
    %v1200 = vld [vmem:[%s1197 + $0x10] sm:$0xff]
    %v1201 = vld [vmem:[%s1197 + $0x18] sm:$0xff]
    %v1202 = vld [vmem:[%s1197 + $0x20] sm:$0xff]
    %v1203 = vld [vmem:[%s1197 + $0x28] sm:$0xff]
    %v1204 = vld [vmem:[%s1197 + $0x30] sm:$0xff]
    %v1205 = vld [vmem:[%s1197 + $0x38] sm:$0xff]
    %v1206 = vld [vmem:[%s1197 + $0x40] sm:$0xff]
    %v1207 = vld [vmem:[%s1197 + $0x48] sm:$0xff]
    %v1208 = vld [vmem:[%s1197 + $0x50] sm:$0xff]
    %v1209 = vld [vmem:[%s1197 + $0x58] sm:$0xff]
    %v1210 = vld [vmem:[%s1197 + $0x60] sm:$0xff]
    %v1211 = vld [vmem:[%s1197 + $0x68] sm:$0xff]
    %v1212 = vld [vmem:[%s1197 + $0x70] sm:$0xff]
    %v1213 = vld [vmem:[%s1197 + $0x78] sm:$0xff]
    %v1214 = vrot.slane %v963, 2
    %v1215 = vrot.slane %v965, 1
    %v1216 = vsel %vm1021, %v1215, %v1214
    %v1217 = vsel %vm1024, %v967, %v1216
    %v1218 = vrot.slane %v969, 7
    %v1219 = vsel %vm1027, %v1218, %v1217
    %v1220 = vrot.slane %v971, 6
    %v1221 = vsel %vm1030, %v1220, %v1219
    %v1222 = vrot.slane %v973, 5
    %v1223 = vsel %vm1033, %v1222, %v1221
    %v1224 = vrot.slane %v975, 4
    %v1225 = vsel %vm1036, %v1224, %v1223
    %v1226 = vrot.slane %v977, 3
    %v1227 = vsel %vm1039, %v1226, %v1225
    %1229 = vmatprep.subr.mxu0 0.0
    %1230 = vmatpush1.msra.mxu0 %v1198
    %1231 = vmatprep.subr.mxu0 0.0
    %1232 = vmatpush1.msra.mxu0 %v1199
    %1233 = vmatprep.subr.mxu0 0.0
    %1234 = vmatpush1.msra.mxu0 %v1200
    %1235 = vmatprep.subr.mxu0 0.0
    %1236 = vmatpush1.msra.mxu0 %v1201
    %1237 = vmatprep.subr.mxu0 0.0
    %1238 = vmatpush1.msra.mxu0 %v1202
    %1239 = vmatprep.subr.mxu0 0.0
    %1240 = vmatpush1.msra.mxu0 %v1203
    %1241 = vmatprep.subr.mxu0 0.0
    %1242 = vmatpush1.msra.mxu0 %v1204
    %1243 = vmatprep.subr.mxu0 0.0
    %1244 = vmatpush1.msra.mxu0 %v1205
    %1245 = vmatprep.subr.mxu0 0.0
    %1246 = vmatpush1.msra.mxu0 %v1206
    %1247 = vmatprep.subr.mxu0 0.0
    %1248 = vmatpush1.msra.mxu0 %v1207
    %1249 = vmatprep.subr.mxu0 0.0
    %1250 = vmatpush1.msra.mxu0 %v1208
    %1251 = vmatprep.subr.mxu0 0.0
    %1252 = vmatpush1.msra.mxu0 %v1209
    %1253 = vmatprep.subr.mxu0 0.0
    %1254 = vmatpush1.msra.mxu0 %v1210
    %1255 = vmatprep.subr.mxu0 0.0
    %1256 = vmatpush1.msra.mxu0 %v1211
    %1257 = vmatprep.subr.mxu0 0.0
    %1258 = vmatpush1.msra.mxu0 %v1212
    %1259 = vmatprep.subr.mxu0 0.0
    %1260 = vmatpush1.msra.mxu0 %v1213
    %1261 = vmatprep.subr.mxu0 0.0
    %1262 = vmatpush1.msra.mxu0 0.0
    %1263 = vmatprep.subr.mxu0 0.0
    %1264 = vmatpush1.msra.mxu0 0.0
    %1265 = vmatprep.subr.mxu0 0.0
    %1266 = vmatpush1.msra.mxu0 0.0
    %1267 = vmatprep.subr.mxu0 0.0
    %1268 = vmatpush1.msra.mxu0 0.0
    %1269 = vmatprep.subr.mxu0 0.0
    %1270 = vmatpush1.msra.mxu0 0.0
    %1271 = vmatprep.subr.mxu0 0.0
    %1272 = vmatpush1.msra.mxu0 0.0
    %1273 = vmatprep.subr.mxu0 0.0
    %1274 = vmatpush1.msra.mxu0 0.0
    %1275 = vmatprep.subr.mxu0 0.0
    %1276 = vmatpush1.msra.mxu0 0.0
    %1277 = vmatprep.subr.mxu0 0.0
    %1278 = vmatpush1.msra.mxu0 0.0
    %1279 = vmatprep.subr.mxu0 0.0
    %1280 = vmatpush1.msra.mxu0 0.0
    %1281 = vmatprep.subr.mxu0 0.0
    %1282 = vmatpush1.msra.mxu0 0.0
    %1283 = vmatprep.subr.mxu0 0.0
    %1284 = vmatpush1.msra.mxu0 0.0
    %1285 = vmatprep.subr.mxu0 0.0
    %1286 = vmatpush1.msra.mxu0 0.0
    %1287 = vmatprep.subr.mxu0 0.0
    %1288 = vmatpush1.msra.mxu0 0.0
    %1289 = vmatprep.subr.mxu0 0.0
    %1290 = vmatpush1.msra.mxu0 0.0
    %1291 = vmatprep.subr.mxu0 0.0
    %1292 = vmatpush1.msra.mxu0 0.0
    %1293 = vmatprep.mubr.f32.mxu0 0.0
    %1294 = vmatmul.mubr.f32.gmra.mrb[0].mxu0 %v1227
    %v1295 = vpop.f32.mrb[0].mxu0
    %v1296 = vadd.f32 0.0, %v1295
    %v1297 = vpop.f32.mrb[0].mxu0
    %1298 = vdwg.mxu0
    %v1299 = vadd.f32 %v1194, %v1296
    %s1300 = scalar_lea.vmem [#allocation5], 384
    %v1301 = vld [vmem:[%s1300] sm:$0xff]
    %v1302 = vld [vmem:[%s1300 + $0x8] sm:$0xff]
    %v1303 = vld [vmem:[%s1300 + $0x10] sm:$0xff]
    %v1304 = vld [vmem:[%s1300 + $0x18] sm:$0xff]
    %v1305 = vld [vmem:[%s1300 + $0x20] sm:$0xff]
    %v1306 = vld [vmem:[%s1300 + $0x28] sm:$0xff]
    %v1307 = vld [vmem:[%s1300 + $0x30] sm:$0xff]
    %v1308 = vld [vmem:[%s1300 + $0x38] sm:$0xff]
    %v1309 = vld [vmem:[%s1300 + $0x40] sm:$0xff]
    %v1310 = vld [vmem:[%s1300 + $0x48] sm:$0xff]
    %v1311 = vld [vmem:[%s1300 + $0x50] sm:$0xff]
    %v1312 = vld [vmem:[%s1300 + $0x58] sm:$0xff]
    %v1313 = vld [vmem:[%s1300 + $0x60] sm:$0xff]
    %v1314 = vld [vmem:[%s1300 + $0x68] sm:$0xff]
    %v1315 = vld [vmem:[%s1300 + $0x70] sm:$0xff]
    %v1316 = vld [vmem:[%s1300 + $0x78] sm:$0xff]
    %v1317 = vrot.slane %v963, 3
    %v1318 = vrot.slane %v965, 2
    %v1319 = vsel %vm1021, %v1318, %v1317
    %v1320 = vrot.slane %v967, 1
    %v1321 = vsel %vm1024, %v1320, %v1319
    %v1322 = vsel %vm1027, %v969, %v1321
    %v1323 = vrot.slane %v971, 7
    %v1324 = vsel %vm1030, %v1323, %v1322
    %v1325 = vrot.slane %v973, 6
    %v1326 = vsel %vm1033, %v1325, %v1324
    %v1327 = vrot.slane %v975, 5
    %v1328 = vsel %vm1036, %v1327, %v1326
    %v1329 = vrot.slane %v977, 4
    %v1330 = vsel %vm1039, %v1329, %v1328
    %1332 = vmatprep.subr.mxu0 0.0
    %1333 = vmatpush1.msra.mxu0 %v1301
    %1334 = vmatprep.subr.mxu0 0.0
    %1335 = vmatpush1.msra.mxu0 %v1302
    %1336 = vmatprep.subr.mxu0 0.0
    %1337 = vmatpush1.msra.mxu0 %v1303
    %1338 = vmatprep.subr.mxu0 0.0
    %1339 = vmatpush1.msra.mxu0 %v1304
    %1340 = vmatprep.subr.mxu0 0.0
    %1341 = vmatpush1.msra.mxu0 %v1305
    %1342 = vmatprep.subr.mxu0 0.0
    %1343 = vmatpush1.msra.mxu0 %v1306
    %1344 = vmatprep.subr.mxu0 0.0
    %1345 = vmatpush1.msra.mxu0 %v1307
    %1346 = vmatprep.subr.mxu0 0.0
    %1347 = vmatpush1.msra.mxu0 %v1308
    %1348 = vmatprep.subr.mxu0 0.0
    %1349 = vmatpush1.msra.mxu0 %v1309
    %1350 = vmatprep.subr.mxu0 0.0
    %1351 = vmatpush1.msra.mxu0 %v1310
    %1352 = vmatprep.subr.mxu0 0.0
    %1353 = vmatpush1.msra.mxu0 %v1311
    %1354 = vmatprep.subr.mxu0 0.0
    %1355 = vmatpush1.msra.mxu0 %v1312
    %1356 = vmatprep.subr.mxu0 0.0
    %1357 = vmatpush1.msra.mxu0 %v1313
    %1358 = vmatprep.subr.mxu0 0.0
    %1359 = vmatpush1.msra.mxu0 %v1314
    %1360 = vmatprep.subr.mxu0 0.0
    %1361 = vmatpush1.msra.mxu0 %v1315
    %1362 = vmatprep.subr.mxu0 0.0
    %1363 = vmatpush1.msra.mxu0 %v1316
    %1364 = vmatprep.subr.mxu0 0.0
    %1365 = vmatpush1.msra.mxu0 0.0
    %1366 = vmatprep.subr.mxu0 0.0
    %1367 = vmatpush1.msra.mxu0 0.0
    %1368 = vmatprep.subr.mxu0 0.0
    %1369 = vmatpush1.msra.mxu0 0.0
    %1370 = vmatprep.subr.mxu0 0.0
    %1371 = vmatpush1.msra.mxu0 0.0
    %1372 = vmatprep.subr.mxu0 0.0
    %1373 = vmatpush1.msra.mxu0 0.0
    %1374 = vmatprep.subr.mxu0 0.0
    %1375 = vmatpush1.msra.mxu0 0.0
    %1376 = vmatprep.subr.mxu0 0.0
    %1377 = vmatpush1.msra.mxu0 0.0
    %1378 = vmatprep.subr.mxu0 0.0
    %1379 = vmatpush1.msra.mxu0 0.0
    %1380 = vmatprep.subr.mxu0 0.0
    %1381 = vmatpush1.msra.mxu0 0.0
    %1382 = vmatprep.subr.mxu0 0.0
    %1383 = vmatpush1.msra.mxu0 0.0
    %1384 = vmatprep.subr.mxu0 0.0
    %1385 = vmatpush1.msra.mxu0 0.0
    %1386 = vmatprep.subr.mxu0 0.0
    %1387 = vmatpush1.msra.mxu0 0.0
    %1388 = vmatprep.subr.mxu0 0.0
    %1389 = vmatpush1.msra.mxu0 0.0
    %1390 = vmatprep.subr.mxu0 0.0
    %1391 = vmatpush1.msra.mxu0 0.0
    %1392 = vmatprep.subr.mxu0 0.0
    %1393 = vmatpush1.msra.mxu0 0.0
    %1394 = vmatprep.subr.mxu0 0.0
    %1395 = vmatpush1.msra.mxu0 0.0
    %1396 = vmatprep.mubr.f32.mxu0 0.0
    %1397 = vmatmul.mubr.f32.gmra.mrb[0].mxu0 %v1330
    %v1398 = vpop.f32.mrb[0].mxu0
    %v1399 = vadd.f32 0.0, %v1398
    %v1400 = vpop.f32.mrb[0].mxu0
    %1401 = vdwg.mxu0
    %v1402 = vadd.f32 %v1299, %v1399
    %s1403 = scalar_lea.vmem [#allocation5], 512
    %v1404 = vld [vmem:[%s1403] sm:$0xff]
    %v1405 = vld [vmem:[%s1403 + $0x8] sm:$0xff]
    %v1406 = vld [vmem:[%s1403 + $0x10] sm:$0xff]
    %v1407 = vld [vmem:[%s1403 + $0x18] sm:$0xff]
    %v1408 = vld [vmem:[%s1403 + $0x20] sm:$0xff]
    %v1409 = vld [vmem:[%s1403 + $0x28] sm:$0xff]
    %v1410 = vld [vmem:[%s1403 + $0x30] sm:$0xff]
    %v1411 = vld [vmem:[%s1403 + $0x38] sm:$0xff]
    %v1412 = vld [vmem:[%s1403 + $0x40] sm:$0xff]
    %v1413 = vld [vmem:[%s1403 + $0x48] sm:$0xff]
    %v1414 = vld [vmem:[%s1403 + $0x50] sm:$0xff]
    %v1415 = vld [vmem:[%s1403 + $0x58] sm:$0xff]
    %v1416 = vld [vmem:[%s1403 + $0x60] sm:$0xff]
    %v1417 = vld [vmem:[%s1403 + $0x68] sm:$0xff]
    %v1418 = vld [vmem:[%s1403 + $0x70] sm:$0xff]
    %v1419 = vld [vmem:[%s1403 + $0x78] sm:$0xff]
    %v1420 = vrot.slane %v963, 4
    %v1421 = vrot.slane %v965, 3
    %v1422 = vsel %vm1021, %v1421, %v1420
    %v1423 = vrot.slane %v967, 2
    %v1424 = vsel %vm1024, %v1423, %v1422
    %v1425 = vrot.slane %v969, 1
    %v1426 = vsel %vm1027, %v1425, %v1424
    %v1427 = vsel %vm1030, %v971, %v1426
    %v1428 = vrot.slane %v973, 7
    %v1429 = vsel %vm1033, %v1428, %v1427
    %v1430 = vrot.slane %v975, 6
    %v1431 = vsel %vm1036, %v1430, %v1429
    %v1432 = vrot.slane %v977, 5
    %v1433 = vsel %vm1039, %v1432, %v1431
    %1435 = vmatprep.subr.mxu0 0.0
    %1436 = vmatpush1.msra.mxu0 %v1404
    %1437 = vmatprep.subr.mxu0 0.0
    %1438 = vmatpush1.msra.mxu0 %v1405
    %1439 = vmatprep.subr.mxu0 0.0
    %1440 = vmatpush1.msra.mxu0 %v1406
    %1441 = vmatprep.subr.mxu0 0.0
    %1442 = vmatpush1.msra.mxu0 %v1407
    %1443 = vmatprep.subr.mxu0 0.0
    %1444 = vmatpush1.msra.mxu0 %v1408
    %1445 = vmatprep.subr.mxu0 0.0
    %1446 = vmatpush1.msra.mxu0 %v1409
    %1447 = vmatprep.subr.mxu0 0.0
    %1448 = vmatpush1.msra.mxu0 %v1410
    %1449 = vmatprep.subr.mxu0 0.0
    %1450 = vmatpush1.msra.mxu0 %v1411
    %1451 = vmatprep.subr.mxu0 0.0
    %1452 = vmatpush1.msra.mxu0 %v1412
    %1453 = vmatprep.subr.mxu0 0.0
    %1454 = vmatpush1.msra.mxu0 %v1413
    %1455 = vmatprep.subr.mxu0 0.0
    %1456 = vmatpush1.msra.mxu0 %v1414
    %1457 = vmatprep.subr.mxu0 0.0
    %1458 = vmatpush1.msra.mxu0 %v1415
    %1459 = vmatprep.subr.mxu0 0.0
    %1460 = vmatpush1.msra.mxu0 %v1416
    %1461 = vmatprep.subr.mxu0 0.0
    %1462 = vmatpush1.msra.mxu0 %v1417
    %1463 = vmatprep.subr.mxu0 0.0
    %1464 = vmatpush1.msra.mxu0 %v1418
    %1465 = vmatprep.subr.mxu0 0.0
    %1466 = vmatpush1.msra.mxu0 %v1419
    %1467 = vmatprep.subr.mxu0 0.0
    %1468 = vmatpush1.msra.mxu0 0.0
    %1469 = vmatprep.subr.mxu0 0.0
    %1470 = vmatpush1.msra.mxu0 0.0
    %1471 = vmatprep.subr.mxu0 0.0
    %1472 = vmatpush1.msra.mxu0 0.0
    %1473 = vmatprep.subr.mxu0 0.0
    %1474 = vmatpush1.msra.mxu0 0.0
    %1475 = vmatprep.subr.mxu0 0.0
    %1476 = vmatpush1.msra.mxu0 0.0
    %1477 = vmatprep.subr.mxu0 0.0
    %1478 = vmatpush1.msra.mxu0 0.0
    %1479 = vmatprep.subr.mxu0 0.0
    %1480 = vmatpush1.msra.mxu0 0.0
    %1481 = vmatprep.subr.mxu0 0.0
    %1482 = vmatpush1.msra.mxu0 0.0
    %1483 = vmatprep.subr.mxu0 0.0
    %1484 = vmatpush1.msra.mxu0 0.0
    %1485 = vmatprep.subr.mxu0 0.0
    %1486 = vmatpush1.msra.mxu0 0.0
    %1487 = vmatprep.subr.mxu0 0.0
    %1488 = vmatpush1.msra.mxu0 0.0
    %1489 = vmatprep.subr.mxu0 0.0
    %1490 = vmatpush1.msra.mxu0 0.0
    %1491 = vmatprep.subr.mxu0 0.0
    %1492 = vmatpush1.msra.mxu0 0.0
    %1493 = vmatprep.subr.mxu0 0.0
    %1494 = vmatpush1.msra.mxu0 0.0
    %1495 = vmatprep.subr.mxu0 0.0
    %1496 = vmatpush1.msra.mxu0 0.0
    %1497 = vmatprep.subr.mxu0 0.0
    %1498 = vmatpush1.msra.mxu0 0.0
    %1499 = vmatprep.mubr.f32.mxu0 0.0
    %1500 = vmatmul.mubr.f32.gmra.mrb[0].mxu0 %v1433
    %v1501 = vpop.f32.mrb[0].mxu0
    %v1502 = vadd.f32 0.0, %v1501
    %v1503 = vpop.f32.mrb[0].mxu0
    %1504 = vdwg.mxu0
    %v1505 = vadd.f32 %v1402, %v1502
    %s1506 = scalar_lea.vmem [#allocation5], 640
    %v1507 = vld [vmem:[%s1506] sm:$0xff]
    %v1508 = vld [vmem:[%s1506 + $0x8] sm:$0xff]
    %v1509 = vld [vmem:[%s1506 + $0x10] sm:$0xff]
    %v1510 = vld [vmem:[%s1506 + $0x18] sm:$0xff]
    %v1511 = vld [vmem:[%s1506 + $0x20] sm:$0xff]
    %v1512 = vld [vmem:[%s1506 + $0x28] sm:$0xff]
    %v1513 = vld [vmem:[%s1506 + $0x30] sm:$0xff]
    %v1514 = vld [vmem:[%s1506 + $0x38] sm:$0xff]
    %v1515 = vld [vmem:[%s1506 + $0x40] sm:$0xff]
    %v1516 = vld [vmem:[%s1506 + $0x48] sm:$0xff]
    %v1517 = vld [vmem:[%s1506 + $0x50] sm:$0xff]
    %v1518 = vld [vmem:[%s1506 + $0x58] sm:$0xff]
    %v1519 = vld [vmem:[%s1506 + $0x60] sm:$0xff]
    %v1520 = vld [vmem:[%s1506 + $0x68] sm:$0xff]
    %v1521 = vld [vmem:[%s1506 + $0x70] sm:$0xff]
    %v1522 = vld [vmem:[%s1506 + $0x78] sm:$0xff]
    %v1523 = vrot.slane %v963, 5
    %v1524 = vrot.slane %v965, 4
    %v1525 = vsel %vm1021, %v1524, %v1523
    %v1526 = vrot.slane %v967, 3
    %v1527 = vsel %vm1024, %v1526, %v1525
    %v1528 = vrot.slane %v969, 2
    %v1529 = vsel %vm1027, %v1528, %v1527
    %v1530 = vrot.slane %v971, 1
    %v1531 = vsel %vm1030, %v1530, %v1529
    %v1532 = vsel %vm1033, %v973, %v1531
    %v1533 = vrot.slane %v975, 7
    %v1534 = vsel %vm1036, %v1533, %v1532
    %v1535 = vrot.slane %v977, 6
    %v1536 = vsel %vm1039, %v1535, %v1534
    %1538 = vmatprep.subr.mxu0 0.0
    %1539 = vmatpush1.msra.mxu0 %v1507
    %1540 = vmatprep.subr.mxu0 0.0
    %1541 = vmatpush1.msra.mxu0 %v1508
    %1542 = vmatprep.subr.mxu0 0.0
    %1543 = vmatpush1.msra.mxu0 %v1509
    %1544 = vmatprep.subr.mxu0 0.0
    %1545 = vmatpush1.msra.mxu0 %v1510
    %1546 = vmatprep.subr.mxu0 0.0
    %1547 = vmatpush1.msra.mxu0 %v1511
    %1548 = vmatprep.subr.mxu0 0.0
    %1549 = vmatpush1.msra.mxu0 %v1512
    %1550 = vmatprep.subr.mxu0 0.0
    %1551 = vmatpush1.msra.mxu0 %v1513
    %1552 = vmatprep.subr.mxu0 0.0
    %1553 = vmatpush1.msra.mxu0 %v1514
    %1554 = vmatprep.subr.mxu0 0.0
    %1555 = vmatpush1.msra.mxu0 %v1515
    %1556 = vmatprep.subr.mxu0 0.0
    %1557 = vmatpush1.msra.mxu0 %v1516
    %1558 = vmatprep.subr.mxu0 0.0
    %1559 = vmatpush1.msra.mxu0 %v1517
    %1560 = vmatprep.subr.mxu0 0.0
    %1561 = vmatpush1.msra.mxu0 %v1518
    %1562 = vmatprep.subr.mxu0 0.0
    %1563 = vmatpush1.msra.mxu0 %v1519
    %1564 = vmatprep.subr.mxu0 0.0
    %1565 = vmatpush1.msra.mxu0 %v1520
    %1566 = vmatprep.subr.mxu0 0.0
    %1567 = vmatpush1.msra.mxu0 %v1521
    %1568 = vmatprep.subr.mxu0 0.0
    %1569 = vmatpush1.msra.mxu0 %v1522
    %1570 = vmatprep.subr.mxu0 0.0
    %1571 = vmatpush1.msra.mxu0 0.0
    %1572 = vmatprep.subr.mxu0 0.0
    %1573 = vmatpush1.msra.mxu0 0.0
    %1574 = vmatprep.subr.mxu0 0.0
    %1575 = vmatpush1.msra.mxu0 0.0
    %1576 = vmatprep.subr.mxu0 0.0
    %1577 = vmatpush1.msra.mxu0 0.0
    %1578 = vmatprep.subr.mxu0 0.0
    %1579 = vmatpush1.msra.mxu0 0.0
    %1580 = vmatprep.subr.mxu0 0.0
    %1581 = vmatpush1.msra.mxu0 0.0
    %1582 = vmatprep.subr.mxu0 0.0
    %1583 = vmatpush1.msra.mxu0 0.0
    %1584 = vmatprep.subr.mxu0 0.0
    %1585 = vmatpush1.msra.mxu0 0.0
    %1586 = vmatprep.subr.mxu0 0.0
    %1587 = vmatpush1.msra.mxu0 0.0
    %1588 = vmatprep.subr.mxu0 0.0
    %1589 = vmatpush1.msra.mxu0 0.0
    %1590 = vmatprep.subr.mxu0 0.0
    %1591 = vmatpush1.msra.mxu0 0.0
    %1592 = vmatprep.subr.mxu0 0.0
    %1593 = vmatpush1.msra.mxu0 0.0
    %1594 = vmatprep.subr.mxu0 0.0
    %1595 = vmatpush1.msra.mxu0 0.0
    %1596 = vmatprep.subr.mxu0 0.0
    %1597 = vmatpush1.msra.mxu0 0.0
    %1598 = vmatprep.subr.mxu0 0.0
    %1599 = vmatpush1.msra.mxu0 0.0
    %1600 = vmatprep.subr.mxu0 0.0
    %1601 = vmatpush1.msra.mxu0 0.0
    %1602 = vmatprep.mubr.f32.mxu0 0.0
    %1603 = vmatmul.mubr.f32.gmra.mrb[0].mxu0 %v1536
    %v1604 = vpop.f32.mrb[0].mxu0
    %v1605 = vadd.f32 0.0, %v1604
    %v1606 = vpop.f32.mrb[0].mxu0
    %1607 = vdwg.mxu0
    %v1608 = vadd.f32 %v1505, %v1605
    %s1609 = scalar_lea.vmem [#allocation5], 768
    %v1610 = vld [vmem:[%s1609] sm:$0xff]
    %v1611 = vld [vmem:[%s1609 + $0x8] sm:$0xff]
    %v1612 = vld [vmem:[%s1609 + $0x10] sm:$0xff]
    %v1613 = vld [vmem:[%s1609 + $0x18] sm:$0xff]
    %v1614 = vld [vmem:[%s1609 + $0x20] sm:$0xff]
    %v1615 = vld [vmem:[%s1609 + $0x28] sm:$0xff]
    %v1616 = vld [vmem:[%s1609 + $0x30] sm:$0xff]
    %v1617 = vld [vmem:[%s1609 + $0x38] sm:$0xff]
    %v1618 = vld [vmem:[%s1609 + $0x40] sm:$0xff]
    %v1619 = vld [vmem:[%s1609 + $0x48] sm:$0xff]
    %v1620 = vld [vmem:[%s1609 + $0x50] sm:$0xff]
    %v1621 = vld [vmem:[%s1609 + $0x58] sm:$0xff]
    %v1622 = vld [vmem:[%s1609 + $0x60] sm:$0xff]
    %v1623 = vld [vmem:[%s1609 + $0x68] sm:$0xff]
    %v1624 = vld [vmem:[%s1609 + $0x70] sm:$0xff]
    %v1625 = vld [vmem:[%s1609 + $0x78] sm:$0xff]
    %v1626 = vrot.slane %v963, 6
    %v1627 = vrot.slane %v965, 5
    %v1628 = vsel %vm1021, %v1627, %v1626
    %v1629 = vrot.slane %v967, 4
    %v1630 = vsel %vm1024, %v1629, %v1628
    %v1631 = vrot.slane %v969, 3
    %v1632 = vsel %vm1027, %v1631, %v1630
    %v1633 = vrot.slane %v971, 2
    %v1634 = vsel %vm1030, %v1633, %v1632
    %v1635 = vrot.slane %v973, 1
    %v1636 = vsel %vm1033, %v1635, %v1634
    %v1637 = vsel %vm1036, %v975, %v1636
    %v1638 = vrot.slane %v977, 7
    %v1639 = vsel %vm1039, %v1638, %v1637
    %1641 = vmatprep.subr.mxu0 0.0
    %1642 = vmatpush1.msra.mxu0 %v1610
    %1643 = vmatprep.subr.mxu0 0.0
    %1644 = vmatpush1.msra.mxu0 %v1611
    %1645 = vmatprep.subr.mxu0 0.0
    %1646 = vmatpush1.msra.mxu0 %v1612
    %1647 = vmatprep.subr.mxu0 0.0
    %1648 = vmatpush1.msra.mxu0 %v1613
    %1649 = vmatprep.subr.mxu0 0.0
    %1650 = vmatpush1.msra.mxu0 %v1614
    %1651 = vmatprep.subr.mxu0 0.0
    %1652 = vmatpush1.msra.mxu0 %v1615
    %1653 = vmatprep.subr.mxu0 0.0
    %1654 = vmatpush1.msra.mxu0 %v1616
    %1655 = vmatprep.subr.mxu0 0.0
    %1656 = vmatpush1.msra.mxu0 %v1617
    %1657 = vmatprep.subr.mxu0 0.0
    %1658 = vmatpush1.msra.mxu0 %v1618
    %1659 = vmatprep.subr.mxu0 0.0
    %1660 = vmatpush1.msra.mxu0 %v1619
    %1661 = vmatprep.subr.mxu0 0.0
    %1662 = vmatpush1.msra.mxu0 %v1620
    %1663 = vmatprep.subr.mxu0 0.0
    %1664 = vmatpush1.msra.mxu0 %v1621
    %1665 = vmatprep.subr.mxu0 0.0
    %1666 = vmatpush1.msra.mxu0 %v1622
    %1667 = vmatprep.subr.mxu0 0.0
    %1668 = vmatpush1.msra.mxu0 %v1623
    %1669 = vmatprep.subr.mxu0 0.0
    %1670 = vmatpush1.msra.mxu0 %v1624
    %1671 = vmatprep.subr.mxu0 0.0
    %1672 = vmatpush1.msra.mxu0 %v1625
    %1673 = vmatprep.subr.mxu0 0.0
    %1674 = vmatpush1.msra.mxu0 0.0
    %1675 = vmatprep.subr.mxu0 0.0
    %1676 = vmatpush1.msra.mxu0 0.0
    %1677 = vmatprep.subr.mxu0 0.0
    %1678 = vmatpush1.msra.mxu0 0.0
    %1679 = vmatprep.subr.mxu0 0.0
    %1680 = vmatpush1.msra.mxu0 0.0
    %1681 = vmatprep.subr.mxu0 0.0
    %1682 = vmatpush1.msra.mxu0 0.0
    %1683 = vmatprep.subr.mxu0 0.0
    %1684 = vmatpush1.msra.mxu0 0.0
    %1685 = vmatprep.subr.mxu0 0.0
    %1686 = vmatpush1.msra.mxu0 0.0
    %1687 = vmatprep.subr.mxu0 0.0
    %1688 = vmatpush1.msra.mxu0 0.0
    %1689 = vmatprep.subr.mxu0 0.0
    %1690 = vmatpush1.msra.mxu0 0.0
    %1691 = vmatprep.subr.mxu0 0.0
    %1692 = vmatpush1.msra.mxu0 0.0
    %1693 = vmatprep.subr.mxu0 0.0
    %1694 = vmatpush1.msra.mxu0 0.0
    %1695 = vmatprep.subr.mxu0 0.0
    %1696 = vmatpush1.msra.mxu0 0.0
    %1697 = vmatprep.subr.mxu0 0.0
    %1698 = vmatpush1.msra.mxu0 0.0
    %1699 = vmatprep.subr.mxu0 0.0
    %1700 = vmatpush1.msra.mxu0 0.0
    %1701 = vmatprep.subr.mxu0 0.0
    %1702 = vmatpush1.msra.mxu0 0.0
    %1703 = vmatprep.subr.mxu0 0.0
    %1704 = vmatpush1.msra.mxu0 0.0
    %1705 = vmatprep.mubr.f32.mxu0 0.0
    %1706 = vmatmul.mubr.f32.gmra.mrb[0].mxu0 %v1639
    %v1707 = vpop.f32.mrb[0].mxu0
    %v1708 = vadd.f32 0.0, %v1707
    %v1709 = vpop.f32.mrb[0].mxu0
    %1710 = vdwg.mxu0
    %v1711 = vadd.f32 %v1608, %v1708
    %s1712 = scalar_lea.vmem [#allocation5], 896
    %v1713 = vld [vmem:[%s1712] sm:$0xff]
    %v1714 = vld [vmem:[%s1712 + $0x8] sm:$0xff]
    %v1715 = vld [vmem:[%s1712 + $0x10] sm:$0xff]
    %v1716 = vld [vmem:[%s1712 + $0x18] sm:$0xff]
    %v1717 = vld [vmem:[%s1712 + $0x20] sm:$0xff]
    %v1718 = vld [vmem:[%s1712 + $0x28] sm:$0xff]
    %v1719 = vld [vmem:[%s1712 + $0x30] sm:$0xff]
    %v1720 = vld [vmem:[%s1712 + $0x38] sm:$0xff]
    %v1721 = vld [vmem:[%s1712 + $0x40] sm:$0xff]
    %v1722 = vld [vmem:[%s1712 + $0x48] sm:$0xff]
    %v1723 = vld [vmem:[%s1712 + $0x50] sm:$0xff]
    %v1724 = vld [vmem:[%s1712 + $0x58] sm:$0xff]
    %v1725 = vld [vmem:[%s1712 + $0x60] sm:$0xff]
    %v1726 = vld [vmem:[%s1712 + $0x68] sm:$0xff]
    %v1727 = vld [vmem:[%s1712 + $0x70] sm:$0xff]
    %v1728 = vld [vmem:[%s1712 + $0x78] sm:$0xff]
    %v1729 = vrot.slane %v963, 7
    %v1730 = vrot.slane %v965, 6
    %v1731 = vsel %vm1021, %v1730, %v1729
    %v1732 = vrot.slane %v967, 5
    %v1733 = vsel %vm1024, %v1732, %v1731
    %v1734 = vrot.slane %v969, 4
    %v1735 = vsel %vm1027, %v1734, %v1733
    %v1736 = vrot.slane %v971, 3
    %v1737 = vsel %vm1030, %v1736, %v1735
    %v1738 = vrot.slane %v973, 2
    %v1739 = vsel %vm1033, %v1738, %v1737
    %v1740 = vrot.slane %v975, 1
    %v1741 = vsel %vm1036, %v1740, %v1739
    %v1742 = vsel %vm1039, %v977, %v1741
    %1744 = vmatprep.subr.mxu0 0.0
    %1745 = vmatpush1.msra.mxu0 %v1713
    %1746 = vmatprep.subr.mxu0 0.0
    %1747 = vmatpush1.msra.mxu0 %v1714
    %1748 = vmatprep.subr.mxu0 0.0
    %1749 = vmatpush1.msra.mxu0 %v1715
    %1750 = vmatprep.subr.mxu0 0.0
    %1751 = vmatpush1.msra.mxu0 %v1716
    %1752 = vmatprep.subr.mxu0 0.0
    %1753 = vmatpush1.msra.mxu0 %v1717
    %1754 = vmatprep.subr.mxu0 0.0
    %1755 = vmatpush1.msra.mxu0 %v1718
    %1756 = vmatprep.subr.mxu0 0.0
    %1757 = vmatpush1.msra.mxu0 %v1719
    %1758 = vmatprep.subr.mxu0 0.0
    %1759 = vmatpush1.msra.mxu0 %v1720
    %1760 = vmatprep.subr.mxu0 0.0
    %1761 = vmatpush1.msra.mxu0 %v1721
    %1762 = vmatprep.subr.mxu0 0.0
    %1763 = vmatpush1.msra.mxu0 %v1722
    %1764 = vmatprep.subr.mxu0 0.0
    %1765 = vmatpush1.msra.mxu0 %v1723
    %1766 = vmatprep.subr.mxu0 0.0
    %1767 = vmatpush1.msra.mxu0 %v1724
    %1768 = vmatprep.subr.mxu0 0.0
    %1769 = vmatpush1.msra.mxu0 %v1725
    %1770 = vmatprep.subr.mxu0 0.0
    %1771 = vmatpush1.msra.mxu0 %v1726
    %1772 = vmatprep.subr.mxu0 0.0
    %1773 = vmatpush1.msra.mxu0 %v1727
    %1774 = vmatprep.subr.mxu0 0.0
    %1775 = vmatpush1.msra.mxu0 %v1728
    %1776 = vmatprep.subr.mxu0 0.0
    %1777 = vmatpush1.msra.mxu0 0.0
    %1778 = vmatprep.subr.mxu0 0.0
    %1779 = vmatpush1.msra.mxu0 0.0
    %1780 = vmatprep.subr.mxu0 0.0
    %1781 = vmatpush1.msra.mxu0 0.0
    %1782 = vmatprep.subr.mxu0 0.0
    %1783 = vmatpush1.msra.mxu0 0.0
    %1784 = vmatprep.subr.mxu0 0.0
    %1785 = vmatpush1.msra.mxu0 0.0
    %1786 = vmatprep.subr.mxu0 0.0
    %1787 = vmatpush1.msra.mxu0 0.0
    %1788 = vmatprep.subr.mxu0 0.0
    %1789 = vmatpush1.msra.mxu0 0.0
    %1790 = vmatprep.subr.mxu0 0.0
    %1791 = vmatpush1.msra.mxu0 0.0
    %1792 = vmatprep.subr.mxu0 0.0
    %1793 = vmatpush1.msra.mxu0 0.0
    %1794 = vmatprep.subr.mxu0 0.0
    %1795 = vmatpush1.msra.mxu0 0.0
    %1796 = vmatprep.subr.mxu0 0.0
    %1797 = vmatpush1.msra.mxu0 0.0
    %1798 = vmatprep.subr.mxu0 0.0
    %1799 = vmatpush1.msra.mxu0 0.0
    %1800 = vmatprep.subr.mxu0 0.0
    %1801 = vmatpush1.msra.mxu0 0.0
    %1802 = vmatprep.subr.mxu0 0.0
    %1803 = vmatpush1.msra.mxu0 0.0
    %1804 = vmatprep.subr.mxu0 0.0
    %1805 = vmatpush1.msra.mxu0 0.0
    %1806 = vmatprep.subr.mxu0 0.0
    %1807 = vmatpush1.msra.mxu0 0.0
    %1808 = vmatprep.mubr.f32.mxu0 0.0
    %1809 = vmatmul.mubr.f32.gmra.mrb[0].mxu0 %v1742
    %v1810 = vpop.f32.mrb[0].mxu0
    %v1811 = vadd.f32 0.0, %v1810
    %v1812 = vpop.f32.mrb[0].mxu0
    %1813 = vdwg.mxu0
    %v1814 = vadd.f32 %v1711, %v1811
    %s1815 = scalar_lea.vmem [#allocation5], 1024
    %v1816 = vld [vmem:[%s1815] sm:$0xff]
    %v1817 = vld [vmem:[%s1815 + $0x8] sm:$0xff]
    %v1818 = vld [vmem:[%s1815 + $0x10] sm:$0xff]
    %v1819 = vld [vmem:[%s1815 + $0x18] sm:$0xff]
    %v1820 = vld [vmem:[%s1815 + $0x20] sm:$0xff]
    %v1821 = vld [vmem:[%s1815 + $0x28] sm:$0xff]
    %v1822 = vld [vmem:[%s1815 + $0x30] sm:$0xff]
    %v1823 = vld [vmem:[%s1815 + $0x38] sm:$0xff]
    %v1824 = vld [vmem:[%s1815 + $0x40] sm:$0xff]
    %v1825 = vld [vmem:[%s1815 + $0x48] sm:$0xff]
    %v1826 = vld [vmem:[%s1815 + $0x50] sm:$0xff]
    %v1827 = vld [vmem:[%s1815 + $0x58] sm:$0xff]
    %v1828 = vld [vmem:[%s1815 + $0x60] sm:$0xff]
    %v1829 = vld [vmem:[%s1815 + $0x68] sm:$0xff]
    %v1830 = vld [vmem:[%s1815 + $0x70] sm:$0xff]
    %v1831 = vld [vmem:[%s1815 + $0x78] sm:$0xff]
    %v1840 = vrot.slane %v966, 7
    %v1841 = vsel %vm1021, %v1840, %v964
    %v1842 = vrot.slane %v968, 6
    %v1843 = vsel %vm1024, %v1842, %v1841
    %v1844 = vrot.slane %v970, 5
    %v1845 = vsel %vm1027, %v1844, %v1843
    %v1846 = vrot.slane %v972, 4
    %v1847 = vsel %vm1030, %v1846, %v1845
    %v1848 = vrot.slane %v974, 3
    %v1849 = vsel %vm1033, %v1848, %v1847
    %v1850 = vrot.slane %v976, 2
    %v1851 = vsel %vm1036, %v1850, %v1849
    %v1852 = vrot.slane %v978, 1
    %v1853 = vsel %vm1039, %v1852, %v1851
    %1855 = vmatprep.subr.mxu0 0.0
    %1856 = vmatpush1.msra.mxu0 %v1816
    %1857 = vmatprep.subr.mxu0 0.0
    %1858 = vmatpush1.msra.mxu0 %v1817
    %1859 = vmatprep.subr.mxu0 0.0
    %1860 = vmatpush1.msra.mxu0 %v1818
    %1861 = vmatprep.subr.mxu0 0.0
    %1862 = vmatpush1.msra.mxu0 %v1819
    %1863 = vmatprep.subr.mxu0 0.0
    %1864 = vmatpush1.msra.mxu0 %v1820
    %1865 = vmatprep.subr.mxu0 0.0
    %1866 = vmatpush1.msra.mxu0 %v1821
    %1867 = vmatprep.subr.mxu0 0.0
    %1868 = vmatpush1.msra.mxu0 %v1822
    %1869 = vmatprep.subr.mxu0 0.0
    %1870 = vmatpush1.msra.mxu0 %v1823
    %1871 = vmatprep.subr.mxu0 0.0
    %1872 = vmatpush1.msra.mxu0 %v1824
    %1873 = vmatprep.subr.mxu0 0.0
    %1874 = vmatpush1.msra.mxu0 %v1825
    %1875 = vmatprep.subr.mxu0 0.0
    %1876 = vmatpush1.msra.mxu0 %v1826
    %1877 = vmatprep.subr.mxu0 0.0
    %1878 = vmatpush1.msra.mxu0 %v1827
    %1879 = vmatprep.subr.mxu0 0.0
    %1880 = vmatpush1.msra.mxu0 %v1828
    %1881 = vmatprep.subr.mxu0 0.0
    %1882 = vmatpush1.msra.mxu0 %v1829
    %1883 = vmatprep.subr.mxu0 0.0
    %1884 = vmatpush1.msra.mxu0 %v1830
    %1885 = vmatprep.subr.mxu0 0.0
    %1886 = vmatpush1.msra.mxu0 %v1831
    %1887 = vmatprep.subr.mxu0 0.0
    %1888 = vmatpush1.msra.mxu0 0.0
    %1889 = vmatprep.subr.mxu0 0.0
    %1890 = vmatpush1.msra.mxu0 0.0
    %1891 = vmatprep.subr.mxu0 0.0
    %1892 = vmatpush1.msra.mxu0 0.0
    %1893 = vmatprep.subr.mxu0 0.0
    %1894 = vmatpush1.msra.mxu0 0.0
    %1895 = vmatprep.subr.mxu0 0.0
    %1896 = vmatpush1.msra.mxu0 0.0
    %1897 = vmatprep.subr.mxu0 0.0
    %1898 = vmatpush1.msra.mxu0 0.0
    %1899 = vmatprep.subr.mxu0 0.0
    %1900 = vmatpush1.msra.mxu0 0.0
    %1901 = vmatprep.subr.mxu0 0.0
    %1902 = vmatpush1.msra.mxu0 0.0
    %1903 = vmatprep.subr.mxu0 0.0
    %1904 = vmatpush1.msra.mxu0 0.0
    %1905 = vmatprep.subr.mxu0 0.0
    %1906 = vmatpush1.msra.mxu0 0.0
    %1907 = vmatprep.subr.mxu0 0.0
    %1908 = vmatpush1.msra.mxu0 0.0
    %1909 = vmatprep.subr.mxu0 0.0
    %1910 = vmatpush1.msra.mxu0 0.0
    %1911 = vmatprep.subr.mxu0 0.0
    %1912 = vmatpush1.msra.mxu0 0.0
    %1913 = vmatprep.subr.mxu0 0.0
    %1914 = vmatpush1.msra.mxu0 0.0
    %1915 = vmatprep.subr.mxu0 0.0
    %1916 = vmatpush1.msra.mxu0 0.0
    %1917 = vmatprep.subr.mxu0 0.0
    %1918 = vmatpush1.msra.mxu0 0.0
    %1919 = vmatprep.mubr.f32.mxu0 0.0
    %1920 = vmatmul.mubr.f32.gmra.mrb[0].mxu0 %v1853
    %v1921 = vpop.f32.mrb[0].mxu0
    %v1922 = vadd.f32 0.0, %v1921
    %v1923 = vpop.f32.mrb[0].mxu0
    %1924 = vdwg.mxu0
    %v1925 = vadd.f32 %v1814, %v1922
    %s1926 = scalar_lea.vmem [#allocation5], 1152
    %v1927 = vld [vmem:[%s1926] sm:$0xff]
    %v1928 = vld [vmem:[%s1926 + $0x8] sm:$0xff]
    %v1929 = vld [vmem:[%s1926 + $0x10] sm:$0xff]
    %v1930 = vld [vmem:[%s1926 + $0x18] sm:$0xff]
    %v1931 = vld [vmem:[%s1926 + $0x20] sm:$0xff]
    %v1932 = vld [vmem:[%s1926 + $0x28] sm:$0xff]
    %v1933 = vld [vmem:[%s1926 + $0x30] sm:$0xff]
    %v1934 = vld [vmem:[%s1926 + $0x38] sm:$0xff]
    %v1935 = vld [vmem:[%s1926 + $0x40] sm:$0xff]
    %v1936 = vld [vmem:[%s1926 + $0x48] sm:$0xff]
    %v1937 = vld [vmem:[%s1926 + $0x50] sm:$0xff]
    %v1938 = vld [vmem:[%s1926 + $0x58] sm:$0xff]
    %v1939 = vld [vmem:[%s1926 + $0x60] sm:$0xff]
    %v1940 = vld [vmem:[%s1926 + $0x68] sm:$0xff]
    %v1941 = vld [vmem:[%s1926 + $0x70] sm:$0xff]
    %v1942 = vld [vmem:[%s1926 + $0x78] sm:$0xff]
    %v1943 = vrot.slane %v964, 1
    %v1944 = vsel %vm1021, %v966, %v1943
    %v1945 = vrot.slane %v968, 7
    %v1946 = vsel %vm1024, %v1945, %v1944
    %v1947 = vrot.slane %v970, 6
    %v1948 = vsel %vm1027, %v1947, %v1946
    %v1949 = vrot.slane %v972, 5
    %v1950 = vsel %vm1030, %v1949, %v1948
    %v1951 = vrot.slane %v974, 4
    %v1952 = vsel %vm1033, %v1951, %v1950
    %v1953 = vrot.slane %v976, 3
    %v1954 = vsel %vm1036, %v1953, %v1952
    %v1955 = vrot.slane %v978, 2
    %v1956 = vsel %vm1039, %v1955, %v1954
    %1958 = vmatprep.subr.mxu0 0.0
    %1959 = vmatpush1.msra.mxu0 %v1927
    %1960 = vmatprep.subr.mxu0 0.0
    %1961 = vmatpush1.msra.mxu0 %v1928
    %1962 = vmatprep.subr.mxu0 0.0
    %1963 = vmatpush1.msra.mxu0 %v1929
    %1964 = vmatprep.subr.mxu0 0.0
    %1965 = vmatpush1.msra.mxu0 %v1930
    %1966 = vmatprep.subr.mxu0 0.0
    %1967 = vmatpush1.msra.mxu0 %v1931
    %1968 = vmatprep.subr.mxu0 0.0
    %1969 = vmatpush1.msra.mxu0 %v1932
    %1970 = vmatprep.subr.mxu0 0.0
    %1971 = vmatpush1.msra.mxu0 %v1933
    %1972 = vmatprep.subr.mxu0 0.0
    %1973 = vmatpush1.msra.mxu0 %v1934
    %1974 = vmatprep.subr.mxu0 0.0
    %1975 = vmatpush1.msra.mxu0 %v1935
    %1976 = vmatprep.subr.mxu0 0.0
    %1977 = vmatpush1.msra.mxu0 %v1936
    %1978 = vmatprep.subr.mxu0 0.0
    %1979 = vmatpush1.msra.mxu0 %v1937
    %1980 = vmatprep.subr.mxu0 0.0
    %1981 = vmatpush1.msra.mxu0 %v1938
    %1982 = vmatprep.subr.mxu0 0.0
    %1983 = vmatpush1.msra.mxu0 %v1939
    %1984 = vmatprep.subr.mxu0 0.0
    %1985 = vmatpush1.msra.mxu0 %v1940
    %1986 = vmatprep.subr.mxu0 0.0
    %1987 = vmatpush1.msra.mxu0 %v1941
    %1988 = vmatprep.subr.mxu0 0.0
    %1989 = vmatpush1.msra.mxu0 %v1942
    %1990 = vmatprep.subr.mxu0 0.0
    %1991 = vmatpush1.msra.mxu0 0.0
    %1992 = vmatprep.subr.mxu0 0.0
    %1993 = vmatpush1.msra.mxu0 0.0
    %1994 = vmatprep.subr.mxu0 0.0
    %1995 = vmatpush1.msra.mxu0 0.0
    %1996 = vmatprep.subr.mxu0 0.0
    %1997 = vmatpush1.msra.mxu0 0.0
    %1998 = vmatprep.subr.mxu0 0.0
    %1999 = vmatpush1.msra.mxu0 0.0
    %2000 = vmatprep.subr.mxu0 0.0
    %2001 = vmatpush1.msra.mxu0 0.0
    %2002 = vmatprep.subr.mxu0 0.0
    %2003 = vmatpush1.msra.mxu0 0.0
    %2004 = vmatprep.subr.mxu0 0.0
    %2005 = vmatpush1.msra.mxu0 0.0
    %2006 = vmatprep.subr.mxu0 0.0
    %2007 = vmatpush1.msra.mxu0 0.0
    %2008 = vmatprep.subr.mxu0 0.0
    %2009 = vmatpush1.msra.mxu0 0.0
    %2010 = vmatprep.subr.mxu0 0.0
    %2011 = vmatpush1.msra.mxu0 0.0
    %2012 = vmatprep.subr.mxu0 0.0
    %2013 = vmatpush1.msra.mxu0 0.0
    %2014 = vmatprep.subr.mxu0 0.0
    %2015 = vmatpush1.msra.mxu0 0.0
    %2016 = vmatprep.subr.mxu0 0.0
    %2017 = vmatpush1.msra.mxu0 0.0
    %2018 = vmatprep.subr.mxu0 0.0
    %2019 = vmatpush1.msra.mxu0 0.0
    %2020 = vmatprep.subr.mxu0 0.0
    %2021 = vmatpush1.msra.mxu0 0.0
    %2022 = vmatprep.mubr.f32.mxu0 0.0
    %2023 = vmatmul.mubr.f32.gmra.mrb[0].mxu0 %v1956
    %v2024 = vpop.f32.mrb[0].mxu0
    %v2025 = vadd.f32 0.0, %v2024
    %v2026 = vpop.f32.mrb[0].mxu0
    %2027 = vdwg.mxu0
    %v2028 = vadd.f32 %v1925, %v2025
    %s2029 = scalar_lea.vmem [#allocation5], 1280
    %v2030 = vld [vmem:[%s2029] sm:$0xff]
    %v2031 = vld [vmem:[%s2029 + $0x8] sm:$0xff]
    %v2032 = vld [vmem:[%s2029 + $0x10] sm:$0xff]
    %v2033 = vld [vmem:[%s2029 + $0x18] sm:$0xff]
    %v2034 = vld [vmem:[%s2029 + $0x20] sm:$0xff]
    %v2035 = vld [vmem:[%s2029 + $0x28] sm:$0xff]
    %v2036 = vld [vmem:[%s2029 + $0x30] sm:$0xff]
    %v2037 = vld [vmem:[%s2029 + $0x38] sm:$0xff]
    %v2038 = vld [vmem:[%s2029 + $0x40] sm:$0xff]
    %v2039 = vld [vmem:[%s2029 + $0x48] sm:$0xff]
    %v2040 = vld [vmem:[%s2029 + $0x50] sm:$0xff]
    %v2041 = vld [vmem:[%s2029 + $0x58] sm:$0xff]
    %v2042 = vld [vmem:[%s2029 + $0x60] sm:$0xff]
    %v2043 = vld [vmem:[%s2029 + $0x68] sm:$0xff]
    %v2044 = vld [vmem:[%s2029 + $0x70] sm:$0xff]
    %v2045 = vld [vmem:[%s2029 + $0x78] sm:$0xff]
    %v2046 = vrot.slane %v964, 2
    %v2047 = vrot.slane %v966, 1
    %v2048 = vsel %vm1021, %v2047, %v2046
    %v2049 = vsel %vm1024, %v968, %v2048
    %v2050 = vrot.slane %v970, 7
    %v2051 = vsel %vm1027, %v2050, %v2049
    %v2052 = vrot.slane %v972, 6
    %v2053 = vsel %vm1030, %v2052, %v2051
    %v2054 = vrot.slane %v974, 5
    %v2055 = vsel %vm1033, %v2054, %v2053
    %v2056 = vrot.slane %v976, 4
    %v2057 = vsel %vm1036, %v2056, %v2055
    %v2058 = vrot.slane %v978, 3
    %v2059 = vsel %vm1039, %v2058, %v2057
    %2061 = vmatprep.subr.mxu0 0.0
    %2062 = vmatpush1.msra.mxu0 %v2030
    %2063 = vmatprep.subr.mxu0 0.0
    %2064 = vmatpush1.msra.mxu0 %v2031
    %2065 = vmatprep.subr.mxu0 0.0
    %2066 = vmatpush1.msra.mxu0 %v2032
    %2067 = vmatprep.subr.mxu0 0.0
    %2068 = vmatpush1.msra.mxu0 %v2033
    %2069 = vmatprep.subr.mxu0 0.0
    %2070 = vmatpush1.msra.mxu0 %v2034
    %2071 = vmatprep.subr.mxu0 0.0
    %2072 = vmatpush1.msra.mxu0 %v2035
    %2073 = vmatprep.subr.mxu0 0.0
    %2074 = vmatpush1.msra.mxu0 %v2036
    %2075 = vmatprep.subr.mxu0 0.0
    %2076 = vmatpush1.msra.mxu0 %v2037
    %2077 = vmatprep.subr.mxu0 0.0
    %2078 = vmatpush1.msra.mxu0 %v2038
    %2079 = vmatprep.subr.mxu0 0.0
    %2080 = vmatpush1.msra.mxu0 %v2039
    %2081 = vmatprep.subr.mxu0 0.0
    %2082 = vmatpush1.msra.mxu0 %v2040
    %2083 = vmatprep.subr.mxu0 0.0
    %2084 = vmatpush1.msra.mxu0 %v2041
    %2085 = vmatprep.subr.mxu0 0.0
    %2086 = vmatpush1.msra.mxu0 %v2042
    %2087 = vmatprep.subr.mxu0 0.0
    %2088 = vmatpush1.msra.mxu0 %v2043
    %2089 = vmatprep.subr.mxu0 0.0
    %2090 = vmatpush1.msra.mxu0 %v2044
    %2091 = vmatprep.subr.mxu0 0.0
    %2092 = vmatpush1.msra.mxu0 %v2045
    %2093 = vmatprep.subr.mxu0 0.0
    %2094 = vmatpush1.msra.mxu0 0.0
    %2095 = vmatprep.subr.mxu0 0.0
    %2096 = vmatpush1.msra.mxu0 0.0
    %2097 = vmatprep.subr.mxu0 0.0
    %2098 = vmatpush1.msra.mxu0 0.0
    %2099 = vmatprep.subr.mxu0 0.0
    %2100 = vmatpush1.msra.mxu0 0.0
    %2101 = vmatprep.subr.mxu0 0.0
    %2102 = vmatpush1.msra.mxu0 0.0
    %2103 = vmatprep.subr.mxu0 0.0
    %2104 = vmatpush1.msra.mxu0 0.0
    %2105 = vmatprep.subr.mxu0 0.0
    %2106 = vmatpush1.msra.mxu0 0.0
    %2107 = vmatprep.subr.mxu0 0.0
    %2108 = vmatpush1.msra.mxu0 0.0
    %2109 = vmatprep.subr.mxu0 0.0
    %2110 = vmatpush1.msra.mxu0 0.0
    %2111 = vmatprep.subr.mxu0 0.0
    %2112 = vmatpush1.msra.mxu0 0.0
    %2113 = vmatprep.subr.mxu0 0.0
    %2114 = vmatpush1.msra.mxu0 0.0
    %2115 = vmatprep.subr.mxu0 0.0
    %2116 = vmatpush1.msra.mxu0 0.0
    %2117 = vmatprep.subr.mxu0 0.0
    %2118 = vmatpush1.msra.mxu0 0.0
    %2119 = vmatprep.subr.mxu0 0.0
    %2120 = vmatpush1.msra.mxu0 0.0
    %2121 = vmatprep.subr.mxu0 0.0
    %2122 = vmatpush1.msra.mxu0 0.0
    %2123 = vmatprep.subr.mxu0 0.0
    %2124 = vmatpush1.msra.mxu0 0.0
    %2125 = vmatprep.mubr.f32.mxu0 0.0
    %2126 = vmatmul.mubr.f32.gmra.mrb[0].mxu0 %v2059
    %v2127 = vpop.f32.mrb[0].mxu0
    %v2128 = vadd.f32 0.0, %v2127
    %v2129 = vpop.f32.mrb[0].mxu0
    %2130 = vdwg.mxu0
    %v2131 = vadd.f32 %v2028, %v2128
    %s2132 = scalar_lea.vmem [#allocation5], 1408
    %v2133 = vld [vmem:[%s2132] sm:$0xff]
    %v2134 = vld [vmem:[%s2132 + $0x8] sm:$0xff]
    %v2135 = vld [vmem:[%s2132 + $0x10] sm:$0xff]
    %v2136 = vld [vmem:[%s2132 + $0x18] sm:$0xff]
    %v2137 = vld [vmem:[%s2132 + $0x20] sm:$0xff]
    %v2138 = vld [vmem:[%s2132 + $0x28] sm:$0xff]
    %v2139 = vld [vmem:[%s2132 + $0x30] sm:$0xff]
    %v2140 = vld [vmem:[%s2132 + $0x38] sm:$0xff]
    %v2141 = vld [vmem:[%s2132 + $0x40] sm:$0xff]
    %v2142 = vld [vmem:[%s2132 + $0x48] sm:$0xff]
    %v2143 = vld [vmem:[%s2132 + $0x50] sm:$0xff]
    %v2144 = vld [vmem:[%s2132 + $0x58] sm:$0xff]
    %v2145 = vld [vmem:[%s2132 + $0x60] sm:$0xff]
    %v2146 = vld [vmem:[%s2132 + $0x68] sm:$0xff]
    %v2147 = vld [vmem:[%s2132 + $0x70] sm:$0xff]
    %v2148 = vld [vmem:[%s2132 + $0x78] sm:$0xff]
    %v2149 = vrot.slane %v964, 3
    %v2150 = vrot.slane %v966, 2
    %v2151 = vsel %vm1021, %v2150, %v2149
    %v2152 = vrot.slane %v968, 1
    %v2153 = vsel %vm1024, %v2152, %v2151
    %v2154 = vsel %vm1027, %v970, %v2153
    %v2155 = vrot.slane %v972, 7
    %v2156 = vsel %vm1030, %v2155, %v2154
    %v2157 = vrot.slane %v974, 6
    %v2158 = vsel %vm1033, %v2157, %v2156
    %v2159 = vrot.slane %v976, 5
    %v2160 = vsel %vm1036, %v2159, %v2158
    %v2161 = vrot.slane %v978, 4
    %v2162 = vsel %vm1039, %v2161, %v2160
    %2164 = vmatprep.subr.mxu0 0.0
    %2165 = vmatpush1.msra.mxu0 %v2133
    %2166 = vmatprep.subr.mxu0 0.0
    %2167 = vmatpush1.msra.mxu0 %v2134
    %2168 = vmatprep.subr.mxu0 0.0
    %2169 = vmatpush1.msra.mxu0 %v2135
    %2170 = vmatprep.subr.mxu0 0.0
    %2171 = vmatpush1.msra.mxu0 %v2136
    %2172 = vmatprep.subr.mxu0 0.0
    %2173 = vmatpush1.msra.mxu0 %v2137
    %2174 = vmatprep.subr.mxu0 0.0
    %2175 = vmatpush1.msra.mxu0 %v2138
    %2176 = vmatprep.subr.mxu0 0.0
    %2177 = vmatpush1.msra.mxu0 %v2139
    %2178 = vmatprep.subr.mxu0 0.0
    %2179 = vmatpush1.msra.mxu0 %v2140
    %2180 = vmatprep.subr.mxu0 0.0
    %2181 = vmatpush1.msra.mxu0 %v2141
    %2182 = vmatprep.subr.mxu0 0.0
    %2183 = vmatpush1.msra.mxu0 %v2142
    %2184 = vmatprep.subr.mxu0 0.0
    %2185 = vmatpush1.msra.mxu0 %v2143
    %2186 = vmatprep.subr.mxu0 0.0
    %2187 = vmatpush1.msra.mxu0 %v2144
    %2188 = vmatprep.subr.mxu0 0.0
    %2189 = vmatpush1.msra.mxu0 %v2145
    %2190 = vmatprep.subr.mxu0 0.0
    %2191 = vmatpush1.msra.mxu0 %v2146
    %2192 = vmatprep.subr.mxu0 0.0
    %2193 = vmatpush1.msra.mxu0 %v2147
    %2194 = vmatprep.subr.mxu0 0.0
    %2195 = vmatpush1.msra.mxu0 %v2148
    %2196 = vmatprep.subr.mxu0 0.0
    %2197 = vmatpush1.msra.mxu0 0.0
    %2198 = vmatprep.subr.mxu0 0.0
    %2199 = vmatpush1.msra.mxu0 0.0
    %2200 = vmatprep.subr.mxu0 0.0
    %2201 = vmatpush1.msra.mxu0 0.0
    %2202 = vmatprep.subr.mxu0 0.0
    %2203 = vmatpush1.msra.mxu0 0.0
    %2204 = vmatprep.subr.mxu0 0.0
    %2205 = vmatpush1.msra.mxu0 0.0
    %2206 = vmatprep.subr.mxu0 0.0
    %2207 = vmatpush1.msra.mxu0 0.0
    %2208 = vmatprep.subr.mxu0 0.0
    %2209 = vmatpush1.msra.mxu0 0.0
    %2210 = vmatprep.subr.mxu0 0.0
    %2211 = vmatpush1.msra.mxu0 0.0
    %2212 = vmatprep.subr.mxu0 0.0
    %2213 = vmatpush1.msra.mxu0 0.0
    %2214 = vmatprep.subr.mxu0 0.0
    %2215 = vmatpush1.msra.mxu0 0.0
    %2216 = vmatprep.subr.mxu0 0.0
    %2217 = vmatpush1.msra.mxu0 0.0
    %2218 = vmatprep.subr.mxu0 0.0
    %2219 = vmatpush1.msra.mxu0 0.0
    %2220 = vmatprep.subr.mxu0 0.0
    %2221 = vmatpush1.msra.mxu0 0.0
    %2222 = vmatprep.subr.mxu0 0.0
    %2223 = vmatpush1.msra.mxu0 0.0
    %2224 = vmatprep.subr.mxu0 0.0
    %2225 = vmatpush1.msra.mxu0 0.0
    %2226 = vmatprep.subr.mxu0 0.0
    %2227 = vmatpush1.msra.mxu0 0.0
    %2228 = vmatprep.mubr.f32.mxu0 0.0
    %2229 = vmatmul.mubr.f32.gmra.mrb[0].mxu0 %v2162
    %v2230 = vpop.f32.mrb[0].mxu0
    %v2231 = vadd.f32 0.0, %v2230
    %v2232 = vpop.f32.mrb[0].mxu0
    %2233 = vdwg.mxu0
    %v2234 = vadd.f32 %v2131, %v2231
    %s2235 = scalar_lea.vmem [#allocation5], 1536
    %v2236 = vld [vmem:[%s2235] sm:$0xff]
    %v2237 = vld [vmem:[%s2235 + $0x8] sm:$0xff]
    %v2238 = vld [vmem:[%s2235 + $0x10] sm:$0xff]
    %v2239 = vld [vmem:[%s2235 + $0x18] sm:$0xff]
    %v2240 = vld [vmem:[%s2235 + $0x20] sm:$0xff]
    %v2241 = vld [vmem:[%s2235 + $0x28] sm:$0xff]
    %v2242 = vld [vmem:[%s2235 + $0x30] sm:$0xff]
    %v2243 = vld [vmem:[%s2235 + $0x38] sm:$0xff]
    %v2244 = vld [vmem:[%s2235 + $0x40] sm:$0xff]
    %v2245 = vld [vmem:[%s2235 + $0x48] sm:$0xff]
    %v2246 = vld [vmem:[%s2235 + $0x50] sm:$0xff]
    %v2247 = vld [vmem:[%s2235 + $0x58] sm:$0xff]
    %v2248 = vld [vmem:[%s2235 + $0x60] sm:$0xff]
    %v2249 = vld [vmem:[%s2235 + $0x68] sm:$0xff]
    %v2250 = vld [vmem:[%s2235 + $0x70] sm:$0xff]
    %v2251 = vld [vmem:[%s2235 + $0x78] sm:$0xff]
    %v2252 = vrot.slane %v964, 4
    %v2253 = vrot.slane %v966, 3
    %v2254 = vsel %vm1021, %v2253, %v2252
    %v2255 = vrot.slane %v968, 2
    %v2256 = vsel %vm1024, %v2255, %v2254
    %v2257 = vrot.slane %v970, 1
    %v2258 = vsel %vm1027, %v2257, %v2256
    %v2259 = vsel %vm1030, %v972, %v2258
    %v2260 = vrot.slane %v974, 7
    %v2261 = vsel %vm1033, %v2260, %v2259
    %v2262 = vrot.slane %v976, 6
    %v2263 = vsel %vm1036, %v2262, %v2261
    %v2264 = vrot.slane %v978, 5
    %v2265 = vsel %vm1039, %v2264, %v2263
    %2267 = vmatprep.subr.mxu0 0.0
    %2268 = vmatpush1.msra.mxu0 %v2236
    %2269 = vmatprep.subr.mxu0 0.0
    %2270 = vmatpush1.msra.mxu0 %v2237
    %2271 = vmatprep.subr.mxu0 0.0
    %2272 = vmatpush1.msra.mxu0 %v2238
    %2273 = vmatprep.subr.mxu0 0.0
    %2274 = vmatpush1.msra.mxu0 %v2239
    %2275 = vmatprep.subr.mxu0 0.0
    %2276 = vmatpush1.msra.mxu0 %v2240
    %2277 = vmatprep.subr.mxu0 0.0
    %2278 = vmatpush1.msra.mxu0 %v2241
    %2279 = vmatprep.subr.mxu0 0.0
    %2280 = vmatpush1.msra.mxu0 %v2242
    %2281 = vmatprep.subr.mxu0 0.0
    %2282 = vmatpush1.msra.mxu0 %v2243
    %2283 = vmatprep.subr.mxu0 0.0
    %2284 = vmatpush1.msra.mxu0 %v2244
    %2285 = vmatprep.subr.mxu0 0.0
    %2286 = vmatpush1.msra.mxu0 %v2245
    %2287 = vmatprep.subr.mxu0 0.0
    %2288 = vmatpush1.msra.mxu0 %v2246
    %2289 = vmatprep.subr.mxu0 0.0
    %2290 = vmatpush1.msra.mxu0 %v2247
    %2291 = vmatprep.subr.mxu0 0.0
    %2292 = vmatpush1.msra.mxu0 %v2248
    %2293 = vmatprep.subr.mxu0 0.0
    %2294 = vmatpush1.msra.mxu0 %v2249
    %2295 = vmatprep.subr.mxu0 0.0
    %2296 = vmatpush1.msra.mxu0 %v2250
    %2297 = vmatprep.subr.mxu0 0.0
    %2298 = vmatpush1.msra.mxu0 %v2251
    %2299 = vmatprep.subr.mxu0 0.0
    %2300 = vmatpush1.msra.mxu0 0.0
    %2301 = vmatprep.subr.mxu0 0.0
    %2302 = vmatpush1.msra.mxu0 0.0
    %2303 = vmatprep.subr.mxu0 0.0
    %2304 = vmatpush1.msra.mxu0 0.0
    %2305 = vmatprep.subr.mxu0 0.0
    %2306 = vmatpush1.msra.mxu0 0.0
    %2307 = vmatprep.subr.mxu0 0.0
    %2308 = vmatpush1.msra.mxu0 0.0
    %2309 = vmatprep.subr.mxu0 0.0
    %2310 = vmatpush1.msra.mxu0 0.0
    %2311 = vmatprep.subr.mxu0 0.0
    %2312 = vmatpush1.msra.mxu0 0.0
    %2313 = vmatprep.subr.mxu0 0.0
    %2314 = vmatpush1.msra.mxu0 0.0
    %2315 = vmatprep.subr.mxu0 0.0
    %2316 = vmatpush1.msra.mxu0 0.0
    %2317 = vmatprep.subr.mxu0 0.0
    %2318 = vmatpush1.msra.mxu0 0.0
    %2319 = vmatprep.subr.mxu0 0.0
    %2320 = vmatpush1.msra.mxu0 0.0
    %2321 = vmatprep.subr.mxu0 0.0
    %2322 = vmatpush1.msra.mxu0 0.0
    %2323 = vmatprep.subr.mxu0 0.0
    %2324 = vmatpush1.msra.mxu0 0.0
    %2325 = vmatprep.subr.mxu0 0.0
    %2326 = vmatpush1.msra.mxu0 0.0
    %2327 = vmatprep.subr.mxu0 0.0
    %2328 = vmatpush1.msra.mxu0 0.0
    %2329 = vmatprep.subr.mxu0 0.0
    %2330 = vmatpush1.msra.mxu0 0.0
    %2331 = vmatprep.mubr.f32.mxu0 0.0
    %2332 = vmatmul.mubr.f32.gmra.mrb[0].mxu0 %v2265
    %v2333 = vpop.f32.mrb[0].mxu0
    %v2334 = vadd.f32 0.0, %v2333
    %v2335 = vpop.f32.mrb[0].mxu0
    %2336 = vdwg.mxu0
    %v2337 = vadd.f32 %v2234, %v2334
    %v2338 = vld [vmem:[%s4] sm:$0x1]
    %v2340 = vlaneseq
    %v2341 = vshrl.u32 %v2340, 7
    %v2342 = vsub.s32 0, %v2341
    %v2343 = vrot.slane %v2338, %v2342
    %v2345 = vadd.f32 %v2337, %v2343
    %2346 = vst [vmem:[%s5] sm:$0xff] %v2345
    // Predicated region
    $region30: #{cnn_forward.1} parent=1 // pred_check
      _
    $region31: #{cnn_forward.1} parent=1 // pred_check_branch
      %2348 = sbr.rel (0) target = $region33
    $region32: #{cnn_forward.1} parent=1 // pred_region
      _
    $region33: #{cnn_forward.1} parent=1 // pred_fallthru
      _
    // Predicated region
    $region34: #{cnn_forward.1} parent=1 // pred_check
      _
    $region35: #{cnn_forward.1} parent=1 // pred_check_branch
      %2350 = sbr.rel (0) target = $region37
    $region36: #{cnn_forward.1} parent=1 // pred_region
      _
    $region37: #{cnn_forward.1} parent=1 // pred_fallthru
      _
    %2351 = vsyncpa [#allocation4], 1
    %2352 = vsyncpa [#allocation6], 1

</llo_original>
